<compile_context>
chip_gen: v6e
topology: v6e:2x2x1
jax: 0.10.0
libtpu: 0.0.40
codegen_flags: <defaults>
</compile_context>

<pallas_src>
import math
import functools

import jax
import jax.numpy as jnp
import numpy as np
from jax import lax
from jax.experimental import pallas as pl
from jax.experimental.pallas import tpu as pltpu


def _gelu_new(x):
    # GPT-2 "gelu_new": 0.5*x*(1+tanh(sqrt(2/pi)*(x+0.044715*x^3)))
    c = math.sqrt(2.0 / math.pi)
    return 0.5 * x * (1.0 + jnp.tanh(c * (x + 0.044715 * x * x * x)))


def _layernorm(x, w, b, eps):
    mu = jnp.mean(x, axis=-1, keepdims=True)
    xc = x - mu
    var = jnp.mean(xc * xc, axis=-1, keepdims=True)
    return xc * lax.rsqrt(var + eps) * w + b


# --------------------------- kernel A: LN1 + K/V ---------------------------
def kv_proj_kernel(x_ref, ln1_w_ref, ln1_b_ref, wk_ref, bk_ref, wv_ref, bv_ref,
                   k_out_ref, v_out_ref, *, num_heads, head_dim, eps):
    # x_ref: (1, TS, D) f32.  Dense LN1 + K/V projections for this sequence tile.
    h = _layernorm(x_ref[0], ln1_w_ref[...], ln1_b_ref[...], eps).astype(jnp.bfloat16)
    k = jnp.dot(h, wk_ref[...], preferred_element_type=jnp.float32) + bk_ref[...]
    v = jnp.dot(h, wv_ref[...], preferred_element_type=jnp.float32) + bv_ref[...]
    v_out_ref[0] = v.astype(jnp.bfloat16)          # merged-head dense V: (TS, D)
    k_t = k.T                                      # (D, TS) f32 -- one transpose per tile
    for hh in range(num_heads):                    # static sublane slices, head-major K^T
        k_out_ref[0, hh] = k_t[hh * head_dim:(hh + 1) * head_dim, :].astype(jnp.bfloat16)


# ------------------------ kernel B: attention + MLP ------------------------
def attn_mlp_kernel(x_ref, k_ref, v_ref,
                    ln1_w_ref, ln1_b_ref, wq_ref, bq_ref, wproj_ref, bproj_ref,
                    ln2_w_ref, ln2_b_ref, wfc1_ref, bfc1_ref, wfc2_ref, bfc2_ref,
                    out_ref, ctx_sc, *, num_heads, head_dim, q_tile, eps):
    qi = pl.program_id(1)
    TQ = q_tile
    T_pad = v_ref.shape[1]
    scale = 1.0 / math.sqrt(head_dim)

    x_q = x_ref[0]                                               # (TQ, D) f32 residual
    h_q = _layernorm(x_q, ln1_w_ref[...], ln1_b_ref[...], eps)
    # dense Q projection (full-D contraction -> full MXU width); 1/sqrt(hd) folded in.
    q_all = jnp.dot(h_q.astype(jnp.bfloat16), wq_ref[...],
                    preferred_element_type=jnp.float32) + bq_ref[...]
    q_all = q_all * scale

    # additive causal bias, once per query tile; padded key columns (col >= T > row)
    # are masked automatically by causality.
    row = qi * TQ + lax.broadcasted_iota(jnp.int32, (TQ, T_pad), 0)
    col = lax.broadcasted_iota(jnp.int32, (TQ, T_pad), 1)
    bias = jnp.where(col <= row, jnp.float32(0.0), jnp.float32(-10000.0))

    for hh in range(num_heads):                                  # static unroll, static offsets
        sl = slice(hh * head_dim, (hh + 1) * head_dim)
        q_h = q_all[:, sl].astype(jnp.bfloat16)                  # (TQ, hd)
        k_h = k_ref[0, hh]                                       # (hd, T_pad) bf16, pre-transposed
        s = jnp.dot(q_h, k_h, preferred_element_type=jnp.float32) + bias
        m = jnp.max(s, axis=-1, keepdims=True)
        e = jnp.exp(s - m)
        inv = pl.reciprocal(jnp.sum(e, axis=-1, keepdims=True), approx=True)
        p = (e * inv).astype(jnp.bfloat16)
        v_h = v_ref[0, :, sl]                                    # (T_pad, hd) bf16
        ctx_sc[:, sl] = jnp.dot(p, v_h,
                                preferred_element_type=jnp.float32).astype(jnp.bfloat16)

    # single dense output projection (replaces the per-head f32 accumulator RMW)
    attn_out = jnp.dot(ctx_sc[...], wproj_ref[...],
                       preferred_element_type=jnp.float32) + bproj_ref[...]
    x1 = x_q + attn_out                                          # residual (f32)

    # LayerNorm 2 + MLP (gelu_new) + residual.  Dropout: eval path -> identity.
    h2 = _layernorm(x1, ln2_w_ref[...], ln2_b_ref[...], eps).astype(jnp.bfloat16)
    f1 = jnp.dot(h2, wfc1_ref[...], preferred_element_type=jnp.float32) + bfc1_ref[...]
    g = _gelu_new(f1).astype(jnp.bfloat16)
    f2 = jnp.dot(g, wfc2_ref[...], preferred_element_type=jnp.float32) + bfc2_ref[...]
    out_ref[0] = (x1 + f2).astype(out_ref.dtype)


# --------------------------------- wrapper ---------------------------------
def _vmem_budget():
    """Generation-aware (vmem_limit_bytes, max query tile)."""
    cap = None
    try:
        cap = int(pltpu.get_tpu_info().vmem_capacity_bytes)
    except Exception:
        cap = None
    if cap is None:
        cap = 64 * 1024 * 1024                       # conservative (v7x-sized) default
    if cap >= 100 * 1024 * 1024:                     # v5e / v6e: 128 MiB physical
        return 112 * 1024 * 1024, 512
    return 48 * 1024 * 1024, 256                     # v7x: 64 MiB physical


def gpt2_block(x, params, *, num_heads, eps=1e-5):
    B, T, D = x.shape
    H = num_heads
    hd = D // H
    I = params["wfc1"].shape[1]

    vmem_limit, tq_cap = _vmem_budget()
    TS = tq_cap if T >= tq_cap else ((T + 7) // 8) * 8   # tile size (multiple of 8)
    T_pad = ((T + TS - 1) // TS) * TS
    NS = T_pad // TS
    x_p = x if T_pad == T else jnp.pad(x, ((0, 0), (0, T_pad - T), (0, 0)))

    # dense weight layout (wrapper-side plumbing), bf16 for the MXU
    wdt = jnp.bfloat16
    wqkv = params["wqkv"]
    wq = wqkv[:, 0 * D:1 * D].astype(wdt)
    wk = wqkv[:, 1 * D:2 * D].astype(wdt)
    wv = wqkv[:, 2 * D:3 * D].astype(wdt)
    bqkv = params["bqkv"].astype(jnp.float32)
    bq, bk, bv = bqkv[:, 0 * D:1 * D], bqkv[:, 1 * D:2 * D], bqkv[:, 2 * D:3 * D]
    wproj = params["wproj"].astype(wdt)
    bproj = params["bproj"].astype(jnp.float32)
    wfc1, bfc1 = params["wfc1"].astype(wdt), params["bfc1"].astype(jnp.float32)
    wfc2, bfc2 = params["wfc2"].astype(wdt), params["bfc2"].astype(jnp.float32)
    ln1_w, ln1_b = params["ln1_w"].astype(jnp.float32), params["ln1_b"].astype(jnp.float32)
    ln2_w, ln2_b = params["ln2_w"].astype(jnp.float32), params["ln2_b"].astype(jnp.float32)

    def run(single_buffer_weights):
        if single_buffer_weights:
            def const_spec(shape, imap):
                # constant index map -> block never changes across the grid:
                # one buffer is enough (saves ~half the weight-resident VMEM).
                return pl.BlockSpec(shape, imap, pipeline_mode=pl.Buffered(1))
        else:
            def const_spec(shape, imap):
                return pl.BlockSpec(shape, imap)

        c2 = lambda s: const_spec(s, lambda b, i: (0, 0))

        # ---------------- kernel A: LN1 + K/V projections ----------------
        kv_cost = pl.CostEstimate(
            flops=int(4 * B * T_pad * D * D),
            transcendentals=0,
            bytes_accessed=int(B * T_pad * D * 4              # x read
                               + 2 * D * D * 2 + 4 * D * 4    # wk/wv + ln/bias params
                               + 2 * B * T_pad * D * 2),      # K,V writes (bf16)
        )
        k_cache, v_cache = pl.pallas_call(
            functools.partial(kv_proj_kernel, num_heads=H, head_dim=hd, eps=eps),
            out_shape=(jax.ShapeDtypeStruct((B, H, hd, T_pad), jnp.bfloat16),
                       jax.ShapeDtypeStruct((B, T_pad, D), jnp.bfloat16)),
            grid_spec=pltpu.PrefetchScalarGridSpec(
                num_scalar_prefetch=0,
                grid=(B, NS),
                in_specs=[
                    pl.BlockSpec((1, TS, D), lambda b, i: (b, i, 0)),   # x tile
                    c2((1, D)), c2((1, D)),                              # ln1 w/b
                    c2((D, D)), c2((1, D)),                              # wk / bk
                    c2((D, D)), c2((1, D)),                              # wv / bv
                ],
                out_specs=(
                    pl.BlockSpec((1, H, hd, TS), lambda b, i: (b, 0, 0, i)),  # K^T head-major
                    pl.BlockSpec((1, TS, D), lambda b, i: (b, i, 0)),         # V merged dense
                ),
            ),
            compiler_params=pltpu.CompilerParams(
                dimension_semantics=("parallel", "parallel"),
                vmem_limit_bytes=vmem_limit,
            ),
            cost_estimate=kv_cost,
        )(x_p, ln1_w, ln1_b, wk, bk, wv, bv)

        # ---------------- kernel B: attention + MLP ----------------
        mn_cost = pl.CostEstimate(
            flops=int(B * (4 * T_pad * D * D + 4 * T_pad * T_pad * D + 4 * T_pad * D * I)),
            transcendentals=int(B * (H * T_pad * T_pad + T_pad * I)),
            bytes_accessed=int(B * T_pad * D * 4              # x read
                               + 2 * B * T_pad * D * 2        # K + V reads (bf16)
                               + (2 * D * D + 2 * D * I) * 2  # wq/wproj/wfc1/wfc2 (bf16)
                               + (7 * D + I) * 4              # biases / LN params
                               + B * T_pad * D * 4),          # output write
        )
        out = pl.pallas_call(
            functools.partial(attn_mlp_kernel, num_heads=H, head_dim=hd,
                              q_tile=TS, eps=eps),
            out_shape=jax.ShapeDtypeStruct((B, T_pad, D), x.dtype),
            grid_spec=pltpu.PrefetchScalarGridSpec(
                num_scalar_prefetch=0,
                grid=(B, NS),
                in_specs=[
                    pl.BlockSpec((1, TS, D), lambda b, i: (b, i, 0)),           # x tile (residual)
                    pl.BlockSpec((1, H, hd, T_pad), lambda b, i: (b, 0, 0, 0)),  # K^T per batch row
                    pl.BlockSpec((1, T_pad, D), lambda b, i: (b, 0, 0)),         # V per batch row
                    c2((1, D)), c2((1, D)),                                      # ln1 w/b
                    c2((D, D)), c2((1, D)),                                      # wq / bq
                    c2((D, D)), c2((1, D)),                                      # wproj / bproj
                    c2((1, D)), c2((1, D)),                                      # ln2 w/b
                    c2((D, I)), c2((1, I)),                                      # fc1 w/b
                    c2((I, D)), c2((1, D)),                                      # fc2 w/b
                ],
                out_specs=pl.BlockSpec((1, TS, D), lambda b, i: (b, i, 0)),
                scratch_shapes=[pltpu.VMEM((TS, D), jnp.bfloat16)],              # merged-head ctx
            ),
            compiler_params=pltpu.CompilerParams(
                dimension_semantics=("parallel", "parallel"),
                vmem_limit_bytes=vmem_limit,
            ),
            cost_estimate=mn_cost,
        )(x_p, k_cache, v_cache,
          ln1_w, ln1_b, wq, bq, wproj, bproj,
          ln2_w, ln2_b, wfc1, bfc1, wfc2, bfc2)
        return out

    try:
        out = jax.block_until_ready(run(True))
    except Exception:
        # pl.Buffered(1) not supported by this Pallas build -> default double buffering.
        out = jax.block_until_ready(run(False))

    return out[:, :T, :] if T_pad != T else out


# ------------------------- pure-JAX f32 reference -------------------------
def gpt2_block_ref(x, p, *, num_heads, eps=1e-5):
    B, T, D = x.shape
    hd = D // num_heads

    def ln(v, w, b):
        mu = jnp.mean(v, -1, keepdims=True)
        var = jnp.mean((v - mu) ** 2, -1, keepdims=True)
        return (v - mu) * lax.rsqrt(var + eps) * w[0] + b[0]

    h = ln(x, p["ln1_w"], p["ln1_b"])
    qkv = h @ p["wqkv"] + p["bqkv"][0]
    q, k, v = jnp.split(qkv, 3, axis=-1)

    def split_heads(t):
        return t.reshape(B, T, num_heads, hd).transpose(0, 2, 1, 3)

    q, k, v = split_heads(q), split_heads(k), split_heads(v)
    s = jnp.einsum("bhtd,bhsd->bhts", q, k) / math.sqrt(hd)
    causal = jnp.tril(jnp.ones((T, T), bool))
    s = jnp.where(causal, s, -10000.0)
    pattn = jax.nn.softmax(s, axis=-1)
    o = jnp.einsum("bhts,bhsd->bhtd", pattn, v)
    o = o.transpose(0, 2, 1, 3).reshape(B, T, D)
    o = o @ p["wproj"] + p["bproj"][0]
    x = x + o
    h2 = ln(x, p["ln2_w"], p["ln2_b"])
    h2 = h2 @ p["wfc1"] + p["bfc1"][0]
    h2 = _gelu_new(h2)
    h2 = h2 @ p["wfc2"] + p["bfc2"][0]
    return x + h2


if __name__ == "__main__":
    # Small GPT2 config: embd_dim=32, n_head=4, seq=8, batch=2, inner=4*embd.
    B, T, D = 2, 8, 32
    num_heads = 4
    inner = 4 * D
    eps = 1e-5

    key = jax.random.PRNGKey(0)
    ks = jax.random.split(key, 8)
    std = 0.02
    params = {
        "ln1_w": jnp.ones((1, D), jnp.float32),
        "ln1_b": jnp.zeros((1, D), jnp.float32),
        "wqkv": (std * jax.random.normal(ks[0], (D, 3 * D))).astype(jnp.float32),
        "bqkv": jnp.zeros((1, 3 * D), jnp.float32),
        "wproj": (std * jax.random.normal(ks[1], (D, D))).astype(jnp.float32),
        "bproj": jnp.zeros((1, D), jnp.float32),
        "ln2_w": jnp.ones((1, D), jnp.float32),
        "ln2_b": jnp.zeros((1, D), jnp.float32),
        "wfc1": (std * jax.random.normal(ks[2], (D, inner))).astype(jnp.float32),
        "bfc1": jnp.zeros((1, inner), jnp.float32),
        "wfc2": (std * jax.random.normal(ks[3], (inner, D))).astype(jnp.float32),
        "bfc2": jnp.zeros((1, D), jnp.float32),
    }

    x = jax.random.normal(ks[4], (B, T, D), dtype=jnp.float32)

    out = gpt2_block(x, params, num_heads=num_heads, eps=eps)
    out = jax.block_until_ready(out)

    ref = gpt2_block_ref(x, params, num_heads=num_heads, eps=eps)
    # bf16 MXU operands (f32 accumulation) => slightly looser tolerance than pure f32.
    np.testing.assert_allclose(np.asarray(out), np.asarray(ref), rtol=3e-3, atol=3e-3)

    # TODO(synk): dropout (attn/resid/mlp) is identity (eval path); layer_past /
    # use_cache / attn_mask / head_mask defaults and the returned attention
    # weights are not exercised/returned.
    print("KERNEL_OK")
</pallas_src>

<mosaic_0001>
module attributes {stable_mosaic.version = 11 : i64} {
  func.func @kv_proj_kernel(%arg0: i32, %arg1: i32, %arg2: memref<1x8x32xf32, #tpu.memory_space<vmem>>, %arg3: memref<1x32xf32, #tpu.memory_space<vmem>>, %arg4: memref<1x32xf32, #tpu.memory_space<vmem>>, %arg5: memref<32x32xbf16, #tpu.memory_space<vmem>>, %arg6: memref<1x32xf32, #tpu.memory_space<vmem>>, %arg7: memref<32x32xbf16, #tpu.memory_space<vmem>>, %arg8: memref<1x32xf32, #tpu.memory_space<vmem>>, %arg9: memref<1x4x8x8xbf16, #tpu.memory_space<vmem>>, %arg10: memref<1x8x32xbf16, #tpu.memory_space<vmem>>) attributes {dimension_semantics = [#tpu.dimension_semantics<parallel>, #tpu.dimension_semantics<parallel>], iteration_bounds = array<i64: 2, 1>, scalar_prefetch = 0 : i64, scratch_operands = 0 : i64, tpu.core_type = #tpu.core_type<tc>, window_params = [{transform_indices = @transform_0, window_bounds = array<i64: 1, 8, 32>}, {pipeline_mode = #tpu.pipeline_mode<synchronous>, transform_indices = @transform_1, window_bounds = array<i64: 1, 32>}, {pipeline_mode = #tpu.pipeline_mode<synchronous>, transform_indices = @transform_2, window_bounds = array<i64: 1, 32>}, {pipeline_mode = #tpu.pipeline_mode<synchronous>, transform_indices = @transform_3, window_bounds = array<i64: 32, 32>}, {pipeline_mode = #tpu.pipeline_mode<synchronous>, transform_indices = @transform_4, window_bounds = array<i64: 1, 32>}, {pipeline_mode = #tpu.pipeline_mode<synchronous>, transform_indices = @transform_5, window_bounds = array<i64: 32, 32>}, {pipeline_mode = #tpu.pipeline_mode<synchronous>, transform_indices = @transform_6, window_bounds = array<i64: 1, 32>}, {transform_indices = @transform_7, window_bounds = array<i64: 1, 4, 8, 8>}, {transform_indices = @transform_8, window_bounds = array<i64: 1, 8, 32>}]} {
    %c0 = arith.constant 0 : index
    %c0_0 = arith.constant 0 : index
    %c0_1 = arith.constant 0 : index
    %0 = vector.load %arg2[%c0, %c0_0, %c0_1] : memref<1x8x32xf32, #tpu.memory_space<vmem>>, vector<1x8x32xf32>
    %1 = vector.shape_cast %0 : vector<1x8x32xf32> to vector<8x32xf32>
    %c0_2 = arith.constant 0 : index
    %c0_3 = arith.constant 0 : index
    %2 = vector.load %arg3[%c0_2, %c0_3] : memref<1x32xf32, #tpu.memory_space<vmem>>, vector<1x32xf32>
    %c0_4 = arith.constant 0 : index
    %c0_5 = arith.constant 0 : index
    %3 = vector.load %arg4[%c0_4, %c0_5] : memref<1x32xf32, #tpu.memory_space<vmem>>, vector<1x32xf32>
    %cst = arith.constant dense<0.000000e+00> : vector<8xf32>
    %4 = vector.multi_reduction <add>, %1, %cst [1] : vector<8x32xf32> to vector<8xf32>
    %5 = vector.shape_cast %4 : vector<8xf32> to vector<8x1xf32>
    %cst_6 = arith.constant 3.200000e+01 : f32
    %6 = vector.broadcast %cst_6 : f32 to vector<8x1xf32>
    %7 = arith.divf %5, %6 : vector<8x1xf32>
    %8 = vector.broadcast %7 : vector<8x1xf32> to vector<8x32xf32>
    %9 = arith.subf %1, %8 : vector<8x32xf32>
    %10 = arith.mulf %9, %9 : vector<8x32xf32>
    %cst_7 = arith.constant dense<0.000000e+00> : vector<8xf32>
    %11 = vector.multi_reduction <add>, %10, %cst_7 [1] : vector<8x32xf32> to vector<8xf32>
    %12 = vector.shape_cast %11 : vector<8xf32> to vector<8x1xf32>
    %cst_8 = arith.constant 3.200000e+01 : f32
    %13 = vector.broadcast %cst_8 : f32 to vector<8x1xf32>
    %14 = arith.divf %12, %13 : vector<8x1xf32>
    %cst_9 = arith.constant 9.99999974E-6 : f32
    %15 = vector.broadcast %cst_9 : f32 to vector<8x1xf32>
    %16 = arith.addf %14, %15 : vector<8x1xf32>
    %17 = math.rsqrt %16 : vector<8x1xf32>
    %18 = vector.broadcast %17 : vector<8x1xf32> to vector<8x32xf32>
    %19 = arith.mulf %9, %18 : vector<8x32xf32>
    %20 = vector.broadcast %2 : vector<1x32xf32> to vector<8x32xf32>
    %21 = arith.mulf %19, %20 : vector<8x32xf32>
    %22 = vector.broadcast %3 : vector<1x32xf32> to vector<8x32xf32>
    %23 = arith.addf %21, %22 : vector<8x32xf32>
    %24 = arith.truncf %23 : vector<8x32xf32> to vector<8x32xbf16>
    %c0_10 = arith.constant 0 : index
    %c0_11 = arith.constant 0 : index
    %25 = vector.load %arg5[%c0_10, %c0_11] : memref<32x32xbf16, #tpu.memory_space<vmem>>, vector<32x32xbf16>
    %cst_12 = arith.constant dense<0.000000e+00> : vector<8x32xf32>
    %26 = tpu.matmul %24, %25, %cst_12 {dimension_numbers = #tpu.dot_dimension_numbers<[1], [0], [0], [1], [0, 0, 1, 1], [], []>} : vector<8x32xbf16>, vector<32x32xbf16>, vector<8x32xf32> -> vector<8x32xf32>
    %c0_13 = arith.constant 0 : index
    %c0_14 = arith.constant 0 : index
    %27 = vector.load %arg6[%c0_13, %c0_14] : memref<1x32xf32, #tpu.memory_space<vmem>>, vector<1x32xf32>
    %28 = vector.broadcast %27 : vector<1x32xf32> to vector<8x32xf32>
    %29 = arith.addf %26, %28 : vector<8x32xf32>
    %c0_15 = arith.constant 0 : index
    %c0_16 = arith.constant 0 : index
    %30 = vector.load %arg7[%c0_15, %c0_16] : memref<32x32xbf16, #tpu.memory_space<vmem>>, vector<32x32xbf16>
    %cst_17 = arith.constant dense<0.000000e+00> : vector<8x32xf32>
    %31 = tpu.matmul %24, %30, %cst_17 {dimension_numbers = #tpu.dot_dimension_numbers<[1], [0], [0], [1], [0, 0, 1, 1], [], []>} : vector<8x32xbf16>, vector<32x32xbf16>, vector<8x32xf32> -> vector<8x32xf32>
    %c0_18 = arith.constant 0 : index
    %c0_19 = arith.constant 0 : index
    %32 = vector.load %arg8[%c0_18, %c0_19] : memref<1x32xf32, #tpu.memory_space<vmem>>, vector<1x32xf32>
    %33 = vector.broadcast %32 : vector<1x32xf32> to vector<8x32xf32>
    %34 = arith.addf %31, %33 : vector<8x32xf32>
    %35 = arith.truncf %34 : vector<8x32xf32> to vector<8x32xbf16>
    %c0_20 = arith.constant 0 : index
    %c0_21 = arith.constant 0 : index
    %c0_22 = arith.constant 0 : index
    %36 = vector.load %arg10[%c0_20, %c0_21, %c0_22] : memref<1x8x32xbf16, #tpu.memory_space<vmem>>, vector<1x8x32xbf16>
    %37 = vector.shape_cast %36 : vector<1x8x32xbf16> to vector<8x32xbf16>
    %38 = vector.shape_cast %35 : vector<8x32xbf16> to vector<1x8x32xbf16>
    tpu.vector_store %arg10[%c0_20, %c0_21, %c0_22], %38 {strides = array<i32>} : memref<1x8x32xbf16, #tpu.memory_space<vmem>>, vector<1x8x32xbf16>,
    %39 = tpu.transpose %29, [1, 0] : vector<8x32xf32> -> vector<32x8xf32>
    %40 = vector.extract_strided_slice %39 {offsets = [0, 0], sizes = [8, 8], strides = [1, 1]} : vector<32x8xf32> to vector<8x8xf32>
    %41 = arith.truncf %40 : vector<8x8xf32> to vector<8x8xbf16>
    %c0_23 = arith.constant 0 : index
    %c0_24 = arith.constant 0 : index
    %c0_25 = arith.constant 0 : index
    %c0_26 = arith.constant 0 : index
    %42 = vector.load %arg9[%c0_23, %c0_24, %c0_25, %c0_26] : memref<1x4x8x8xbf16, #tpu.memory_space<vmem>>, vector<1x1x8x8xbf16>
    %43 = vector.shape_cast %42 : vector<1x1x8x8xbf16> to vector<8x8xbf16>
    %44 = vector.shape_cast %41 : vector<8x8xbf16> to vector<1x1x8x8xbf16>
    tpu.vector_store %arg9[%c0_23, %c0_24, %c0_25, %c0_26], %44 {strides = array<i32>} : memref<1x4x8x8xbf16, #tpu.memory_space<vmem>>, vector<1x1x8x8xbf16>,
    %45 = vector.extract_strided_slice %39 {offsets = [8, 0], sizes = [8, 8], strides = [1, 1]} : vector<32x8xf32> to vector<8x8xf32>
    %46 = arith.truncf %45 : vector<8x8xf32> to vector<8x8xbf16>
    %c0_27 = arith.constant 0 : index
    %c1 = arith.constant 1 : index
    %c0_28 = arith.constant 0 : index
    %c0_29 = arith.constant 0 : index
    %47 = vector.load %arg9[%c0_27, %c1, %c0_28, %c0_29] : memref<1x4x8x8xbf16, #tpu.memory_space<vmem>>, vector<1x1x8x8xbf16>
    %48 = vector.shape_cast %47 : vector<1x1x8x8xbf16> to vector<8x8xbf16>
    %49 = vector.shape_cast %46 : vector<8x8xbf16> to vector<1x1x8x8xbf16>
    tpu.vector_store %arg9[%c0_27, %c1, %c0_28, %c0_29], %49 {strides = array<i32>} : memref<1x4x8x8xbf16, #tpu.memory_space<vmem>>, vector<1x1x8x8xbf16>,
    %50 = vector.extract_strided_slice %39 {offsets = [16, 0], sizes = [8, 8], strides = [1, 1]} : vector<32x8xf32> to vector<8x8xf32>
    %51 = arith.truncf %50 : vector<8x8xf32> to vector<8x8xbf16>
    %c0_30 = arith.constant 0 : index
    %c2 = arith.constant 2 : index
    %c0_31 = arith.constant 0 : index
    %c0_32 = arith.constant 0 : index
    %52 = vector.load %arg9[%c0_30, %c2, %c0_31, %c0_32] : memref<1x4x8x8xbf16, #tpu.memory_space<vmem>>, vector<1x1x8x8xbf16>
    %53 = vector.shape_cast %52 : vector<1x1x8x8xbf16> to vector<8x8xbf16>
    %54 = vector.shape_cast %51 : vector<8x8xbf16> to vector<1x1x8x8xbf16>
    tpu.vector_store %arg9[%c0_30, %c2, %c0_31, %c0_32], %54 {strides = array<i32>} : memref<1x4x8x8xbf16, #tpu.memory_space<vmem>>, vector<1x1x8x8xbf16>,
    %55 = vector.extract_strided_slice %39 {offsets = [24, 0], sizes = [8, 8], strides = [1, 1]} : vector<32x8xf32> to vector<8x8xf32>
    %56 = arith.truncf %55 : vector<8x8xf32> to vector<8x8xbf16>
    %c0_33 = arith.constant 0 : index
    %c3 = arith.constant 3 : index
    %c0_34 = arith.constant 0 : index
    %c0_35 = arith.constant 0 : index
    %57 = vector.load %arg9[%c0_33, %c3, %c0_34, %c0_35] : memref<1x4x8x8xbf16, #tpu.memory_space<vmem>>, vector<1x1x8x8xbf16>
    %58 = vector.shape_cast %57 : vector<1x1x8x8xbf16> to vector<8x8xbf16>
    %59 = vector.shape_cast %56 : vector<8x8xbf16> to vector<1x1x8x8xbf16>
    tpu.vector_store %arg9[%c0_33, %c3, %c0_34, %c0_35], %59 {strides = array<i32>} : memref<1x4x8x8xbf16, #tpu.memory_space<vmem>>, vector<1x1x8x8xbf16>,
    return
  }
  func.func @transform_0(%arg0: i32, %arg1: i32) -> (i32, i32, i32) {
    %c0_i32 = arith.constant 0 : i32
    %c0_i32_0 = arith.constant 0 : i32
    return %arg0, %arg1, %c0_i32 : i32, i32, i32
  }
  func.func @transform_1(%arg0: i32, %arg1: i32) -> (i32, i32) {
    %c0_i32 = arith.constant 0 : i32
    %c0_i32_0 = arith.constant 0 : i32
    %c0_i32_1 = arith.constant 0 : i32
    return %c0_i32, %c0_i32_0 : i32, i32
  }
  func.func @transform_2(%arg0: i32, %arg1: i32) -> (i32, i32) {
    %c0_i32 = arith.constant 0 : i32
    %c0_i32_0 = arith.constant 0 : i32
    %c0_i32_1 = arith.constant 0 : i32
    return %c0_i32, %c0_i32_0 : i32, i32
  }
  func.func @transform_3(%arg0: i32, %arg1: i32) -> (i32, i32) {
    %c0_i32 = arith.constant 0 : i32
    %c0_i32_0 = arith.constant 0 : i32
    %c0_i32_1 = arith.constant 0 : i32
    return %c0_i32, %c0_i32_0 : i32, i32
  }
  func.func @transform_4(%arg0: i32, %arg1: i32) -> (i32, i32) {
    %c0_i32 = arith.constant 0 : i32
    %c0_i32_0 = arith.constant 0 : i32
    %c0_i32_1 = arith.constant 0 : i32
    return %c0_i32, %c0_i32_0 : i32, i32
  }
  func.func @transform_5(%arg0: i32, %arg1: i32) -> (i32, i32) {
    %c0_i32 = arith.constant 0 : i32
    %c0_i32_0 = arith.constant 0 : i32
    %c0_i32_1 = arith.constant 0 : i32
    return %c0_i32, %c0_i32_0 : i32, i32
  }
  func.func @transform_6(%arg0: i32, %arg1: i32) -> (i32, i32) {
    %c0_i32 = arith.constant 0 : i32
    %c0_i32_0 = arith.constant 0 : i32
    %c0_i32_1 = arith.constant 0 : i32
    return %c0_i32, %c0_i32_0 : i32, i32
  }
  func.func @transform_7(%arg0: i32, %arg1: i32) -> (i32, i32, i32, i32) {
    %c0_i32 = arith.constant 0 : i32
    %c0_i32_0 = arith.constant 0 : i32
    %c0_i32_1 = arith.constant 0 : i32
    return %arg0, %c0_i32, %c0_i32_0, %arg1 : i32, i32, i32, i32
  }
  func.func @transform_8(%arg0: i32, %arg1: i32) -> (i32, i32, i32) {
    %c0_i32 = arith.constant 0 : i32
    %c0_i32_0 = arith.constant 0 : i32
    return %arg0, %arg1, %c0_i32 : i32, i32, i32
  }
}

module attributes {stable_mosaic.version = 11 : i64} {
  func.func @kv_proj_kernel(%arg0: i32, %arg1: i32, %arg2: memref<1x8x32xf32, #tpu.memory_space<vmem>>, %arg3: memref<1x32xf32, #tpu.memory_space<vmem>>, %arg4: memref<1x32xf32, #tpu.memory_space<vmem>>, %arg5: memref<32x32xbf16, #tpu.memory_space<vmem>>, %arg6: memref<1x32xf32, #tpu.memory_space<vmem>>, %arg7: memref<32x32xbf16, #tpu.memory_space<vmem>>, %arg8: memref<1x32xf32, #tpu.memory_space<vmem>>, %arg9: memref<1x4x8x8xbf16, #tpu.memory_space<vmem>>, %arg10: memref<1x8x32xbf16, #tpu.memory_space<vmem>>) attributes {dimension_semantics = [#tpu.dimension_semantics<parallel>, #tpu.dimension_semantics<parallel>], iteration_bounds = array<i64: 2, 1>, scalar_prefetch = 0 : i64, scratch_operands = 0 : i64, tpu.core_type = #tpu.core_type<tc>, window_params = [{transform_indices = @transform_0, window_bounds = array<i64: 1, 8, 32>}, {pipeline_mode = #tpu.pipeline_mode<synchronous>, transform_indices = @transform_1, window_bounds = array<i64: 1, 32>}, {pipeline_mode = #tpu.pipeline_mode<synchronous>, transform_indices = @transform_2, window_bounds = array<i64: 1, 32>}, {pipeline_mode = #tpu.pipeline_mode<synchronous>, transform_indices = @transform_3, window_bounds = array<i64: 32, 32>}, {pipeline_mode = #tpu.pipeline_mode<synchronous>, transform_indices = @transform_4, window_bounds = array<i64: 1, 32>}, {pipeline_mode = #tpu.pipeline_mode<synchronous>, transform_indices = @transform_5, window_bounds = array<i64: 32, 32>}, {pipeline_mode = #tpu.pipeline_mode<synchronous>, transform_indices = @transform_6, window_bounds = array<i64: 1, 32>}, {transform_indices = @transform_7, window_bounds = array<i64: 1, 4, 8, 8>}, {transform_indices = @transform_8, window_bounds = array<i64: 1, 8, 32>}]} {
    %c0 = arith.constant 0 : index
    %c0_0 = arith.constant 0 : index
    %c0_1 = arith.constant 0 : index
    %0 = vector.load %arg2[%c0, %c0_0, %c0_1] : memref<1x8x32xf32, #tpu.memory_space<vmem>>, vector<1x8x32xf32>
    %1 = vector.shape_cast %0 : vector<1x8x32xf32> to vector<8x32xf32>
    %c0_2 = arith.constant 0 : index
    %c0_3 = arith.constant 0 : index
    %2 = vector.load %arg3[%c0_2, %c0_3] : memref<1x32xf32, #tpu.memory_space<vmem>>, vector<1x32xf32>
    %c0_4 = arith.constant 0 : index
    %c0_5 = arith.constant 0 : index
    %3 = vector.load %arg4[%c0_4, %c0_5] : memref<1x32xf32, #tpu.memory_space<vmem>>, vector<1x32xf32>
    %cst = arith.constant dense<0.000000e+00> : vector<8xf32>
    %4 = vector.multi_reduction <add>, %1, %cst [1] : vector<8x32xf32> to vector<8xf32>
    %5 = vector.shape_cast %4 : vector<8xf32> to vector<8x1xf32>
    %cst_6 = arith.constant 3.200000e+01 : f32
    %6 = vector.broadcast %cst_6 : f32 to vector<8x1xf32>
    %7 = arith.divf %5, %6 : vector<8x1xf32>
    %8 = vector.broadcast %7 : vector<8x1xf32> to vector<8x32xf32>
    %9 = arith.subf %1, %8 : vector<8x32xf32>
    %10 = arith.mulf %9, %9 : vector<8x32xf32>
    %cst_7 = arith.constant dense<0.000000e+00> : vector<8xf32>
    %11 = vector.multi_reduction <add>, %10, %cst_7 [1] : vector<8x32xf32> to vector<8xf32>
    %12 = vector.shape_cast %11 : vector<8xf32> to vector<8x1xf32>
    %cst_8 = arith.constant 3.200000e+01 : f32
    %13 = vector.broadcast %cst_8 : f32 to vector<8x1xf32>
    %14 = arith.divf %12, %13 : vector<8x1xf32>
    %cst_9 = arith.constant 9.99999974E-6 : f32
    %15 = vector.broadcast %cst_9 : f32 to vector<8x1xf32>
    %16 = arith.addf %14, %15 : vector<8x1xf32>
    %17 = math.rsqrt %16 : vector<8x1xf32>
    %18 = vector.broadcast %17 : vector<8x1xf32> to vector<8x32xf32>
    %19 = arith.mulf %9, %18 : vector<8x32xf32>
    %20 = vector.broadcast %2 : vector<1x32xf32> to vector<8x32xf32>
    %21 = arith.mulf %19, %20 : vector<8x32xf32>
    %22 = vector.broadcast %3 : vector<1x32xf32> to vector<8x32xf32>
    %23 = arith.addf %21, %22 : vector<8x32xf32>
    %24 = arith.truncf %23 : vector<8x32xf32> to vector<8x32xbf16>
    %c0_10 = arith.constant 0 : index
    %c0_11 = arith.constant 0 : index
    %25 = vector.load %arg5[%c0_10, %c0_11] : memref<32x32xbf16, #tpu.memory_space<vmem>>, vector<32x32xbf16>
    %cst_12 = arith.constant dense<0.000000e+00> : vector<8x32xf32>
    %26 = tpu.matmul %24, %25, %cst_12 {dimension_numbers = #tpu.dot_dimension_numbers<[1], [0], [0], [1], [0, 0, 1, 1], [], []>} : vector<8x32xbf16>, vector<32x32xbf16>, vector<8x32xf32> -> vector<8x32xf32>
    %c0_13 = arith.constant 0 : index
    %c0_14 = arith.constant 0 : index
    %27 = vector.load %arg6[%c0_13, %c0_14] : memref<1x32xf32, #tpu.memory_space<vmem>>, vector<1x32xf32>
    %28 = vector.broadcast %27 : vector<1x32xf32> to vector<8x32xf32>
    %29 = arith.addf %26, %28 : vector<8x32xf32>
    %c0_15 = arith.constant 0 : index
    %c0_16 = arith.constant 0 : index
    %30 = vector.load %arg7[%c0_15, %c0_16] : memref<32x32xbf16, #tpu.memory_space<vmem>>, vector<32x32xbf16>
    %cst_17 = arith.constant dense<0.000000e+00> : vector<8x32xf32>
    %31 = tpu.matmul %24, %30, %cst_17 {dimension_numbers = #tpu.dot_dimension_numbers<[1], [0], [0], [1], [0, 0, 1, 1], [], []>} : vector<8x32xbf16>, vector<32x32xbf16>, vector<8x32xf32> -> vector<8x32xf32>
    %c0_18 = arith.constant 0 : index
    %c0_19 = arith.constant 0 : index
    %32 = vector.load %arg8[%c0_18, %c0_19] : memref<1x32xf32, #tpu.memory_space<vmem>>, vector<1x32xf32>
    %33 = vector.broadcast %32 : vector<1x32xf32> to vector<8x32xf32>
    %34 = arith.addf %31, %33 : vector<8x32xf32>
    %35 = arith.truncf %34 : vector<8x32xf32> to vector<8x32xbf16>
    %c0_20 = arith.constant 0 : index
    %c0_21 = arith.constant 0 : index
    %c0_22 = arith.constant 0 : index
    %36 = vector.load %arg10[%c0_20, %c0_21, %c0_22] : memref<1x8x32xbf16, #tpu.memory_space<vmem>>, vector<1x8x32xbf16>
    %37 = vector.shape_cast %36 : vector<1x8x32xbf16> to vector<8x32xbf16>
    %38 = vector.shape_cast %35 : vector<8x32xbf16> to vector<1x8x32xbf16>
    tpu.vector_store %arg10[%c0_20, %c0_21, %c0_22], %38 {strides = array<i32>} : memref<1x8x32xbf16, #tpu.memory_space<vmem>>, vector<1x8x32xbf16>,
    %39 = tpu.transpose %29, [1, 0] : vector<8x32xf32> -> vector<32x8xf32>
    %40 = vector.extract_strided_slice %39 {offsets = [0, 0], sizes = [8, 8], strides = [1, 1]} : vector<32x8xf32> to vector<8x8xf32>
    %41 = arith.truncf %40 : vector<8x8xf32> to vector<8x8xbf16>
    %c0_23 = arith.constant 0 : index
    %c0_24 = arith.constant 0 : index
    %c0_25 = arith.constant 0 : index
    %c0_26 = arith.constant 0 : index
    %42 = vector.load %arg9[%c0_23, %c0_24, %c0_25, %c0_26] : memref<1x4x8x8xbf16, #tpu.memory_space<vmem>>, vector<1x1x8x8xbf16>
    %43 = vector.shape_cast %42 : vector<1x1x8x8xbf16> to vector<8x8xbf16>
    %44 = vector.shape_cast %41 : vector<8x8xbf16> to vector<1x1x8x8xbf16>
    tpu.vector_store %arg9[%c0_23, %c0_24, %c0_25, %c0_26], %44 {strides = array<i32>} : memref<1x4x8x8xbf16, #tpu.memory_space<vmem>>, vector<1x1x8x8xbf16>,
    %45 = vector.extract_strided_slice %39 {offsets = [8, 0], sizes = [8, 8], strides = [1, 1]} : vector<32x8xf32> to vector<8x8xf32>
    %46 = arith.truncf %45 : vector<8x8xf32> to vector<8x8xbf16>
    %c0_27 = arith.constant 0 : index
    %c1 = arith.constant 1 : index
    %c0_28 = arith.constant 0 : index
    %c0_29 = arith.constant 0 : index
    %47 = vector.load %arg9[%c0_27, %c1, %c0_28, %c0_29] : memref<1x4x8x8xbf16, #tpu.memory_space<vmem>>, vector<1x1x8x8xbf16>
    %48 = vector.shape_cast %47 : vector<1x1x8x8xbf16> to vector<8x8xbf16>
    %49 = vector.shape_cast %46 : vector<8x8xbf16> to vector<1x1x8x8xbf16>
    tpu.vector_store %arg9[%c0_27, %c1, %c0_28, %c0_29], %49 {strides = array<i32>} : memref<1x4x8x8xbf16, #tpu.memory_space<vmem>>, vector<1x1x8x8xbf16>,
    %50 = vector.extract_strided_slice %39 {offsets = [16, 0], sizes = [8, 8], strides = [1, 1]} : vector<32x8xf32> to vector<8x8xf32>
    %51 = arith.truncf %50 : vector<8x8xf32> to vector<8x8xbf16>
    %c0_30 = arith.constant 0 : index
    %c2 = arith.constant 2 : index
    %c0_31 = arith.constant 0 : index
    %c0_32 = arith.constant 0 : index
    %52 = vector.load %arg9[%c0_30, %c2, %c0_31, %c0_32] : memref<1x4x8x8xbf16, #tpu.memory_space<vmem>>, vector<1x1x8x8xbf16>
    %53 = vector.shape_cast %52 : vector<1x1x8x8xbf16> to vector<8x8xbf16>
    %54 = vector.shape_cast %51 : vector<8x8xbf16> to vector<1x1x8x8xbf16>
    tpu.vector_store %arg9[%c0_30, %c2, %c0_31, %c0_32], %54 {strides = array<i32>} : memref<1x4x8x8xbf16, #tpu.memory_space<vmem>>, vector<1x1x8x8xbf16>,
    %55 = vector.extract_strided_slice %39 {offsets = [24, 0], sizes = [8, 8], strides = [1, 1]} : vector<32x8xf32> to vector<8x8xf32>
    %56 = arith.truncf %55 : vector<8x8xf32> to vector<8x8xbf16>
    %c0_33 = arith.constant 0 : index
    %c3 = arith.constant 3 : index
    %c0_34 = arith.constant 0 : index
    %c0_35 = arith.constant 0 : index
    %57 = vector.load %arg9[%c0_33, %c3, %c0_34, %c0_35] : memref<1x4x8x8xbf16, #tpu.memory_space<vmem>>, vector<1x1x8x8xbf16>
    %58 = vector.shape_cast %57 : vector<1x1x8x8xbf16> to vector<8x8xbf16>
    %59 = vector.shape_cast %56 : vector<8x8xbf16> to vector<1x1x8x8xbf16>
    tpu.vector_store %arg9[%c0_33, %c3, %c0_34, %c0_35], %59 {strides = array<i32>} : memref<1x4x8x8xbf16, #tpu.memory_space<vmem>>, vector<1x1x8x8xbf16>,
    return
  }
  func.func @transform_0(%arg0: i32, %arg1: i32) -> (i32, i32, i32) {
    %c0_i32 = arith.constant 0 : i32
    %c0_i32_0 = arith.constant 0 : i32
    return %arg0, %arg1, %c0_i32 : i32, i32, i32
  }
  func.func @transform_1(%arg0: i32, %arg1: i32) -> (i32, i32) {
    %c0_i32 = arith.constant 0 : i32
    %c0_i32_0 = arith.constant 0 : i32
    %c0_i32_1 = arith.constant 0 : i32
    return %c0_i32, %c0_i32_0 : i32, i32
  }
  func.func @transform_2(%arg0: i32, %arg1: i32) -> (i32, i32) {
    %c0_i32 = arith.constant 0 : i32
    %c0_i32_0 = arith.constant 0 : i32
    %c0_i32_1 = arith.constant 0 : i32
    return %c0_i32, %c0_i32_0 : i32, i32
  }
  func.func @transform_3(%arg0: i32, %arg1: i32) -> (i32, i32) {
    %c0_i32 = arith.constant 0 : i32
    %c0_i32_0 = arith.constant 0 : i32
    %c0_i32_1 = arith.constant 0 : i32
    return %c0_i32, %c0_i32_0 : i32, i32
  }
  func.func @transform_4(%arg0: i32, %arg1: i32) -> (i32, i32) {
    %c0_i32 = arith.constant 0 : i32
    %c0_i32_0 = arith.constant 0 : i32
    %c0_i32_1 = arith.constant 0 : i32
    return %c0_i32, %c0_i32_0 : i32, i32
  }
  func.func @transform_5(%arg0: i32, %arg1: i32) -> (i32, i32) {
    %c0_i32 = arith.constant 0 : i32
    %c0_i32_0 = arith.constant 0 : i32
    %c0_i32_1 = arith.constant 0 : i32
    return %c0_i32, %c0_i32_0 : i32, i32
  }
  func.func @transform_6(%arg0: i32, %arg1: i32) -> (i32, i32) {
    %c0_i32 = arith.constant 0 : i32
    %c0_i32_0 = arith.constant 0 : i32
    %c0_i32_1 = arith.constant 0 : i32
    return %c0_i32, %c0_i32_0 : i32, i32
  }
  func.func @transform_7(%arg0: i32, %arg1: i32) -> (i32, i32, i32, i32) {
    %c0_i32 = arith.constant 0 : i32
    %c0_i32_0 = arith.constant 0 : i32
    %c0_i32_1 = arith.constant 0 : i32
    return %arg0, %c0_i32, %c0_i32_0, %arg1 : i32, i32, i32, i32
  }
  func.func @transform_8(%arg0: i32, %arg1: i32) -> (i32, i32, i32) {
    %c0_i32 = arith.constant 0 : i32
    %c0_i32_0 = arith.constant 0 : i32
    return %arg0, %arg1, %c0_i32 : i32, i32, i32
  }
}

</mosaic_0001>

<llo_original>
// kernel: tpu_custom_call.1
$region0: #{tpu_custom_call.1}
  #allocation0 [shape = 'u32[]', space=smem, size = 0x4, offset = 0x4, fixed_abs, tag = 'smem constant byte address 0x4 - core index']
  #allocation1 [shape = 'u32[144,128]{1,0:T(1,128)}', space=vmem, size = 0x12000, scoped, tag = 'internal scratch']
  %s0 = inlined_call_operand.hbm [shape: f32[2,8,32], index: 0, kind: input, shape index: {}]
  %s1 = inlined_call_operand.vmem [shape: f32[1,32], index: 1, kind: input, shape index: {}]
  %s2 = inlined_call_operand.vmem [shape: f32[1,32], index: 2, kind: input, shape index: {}]
  %s3 = inlined_call_operand.hbm [shape: bf16[32,32], index: 3, kind: input, shape index: {}]
  %s4 = inlined_call_operand.vmem [shape: f32[1,32], index: 4, kind: input, shape index: {}]
  %s5 = inlined_call_operand.hbm [shape: bf16[32,32], index: 5, kind: input, shape index: {}]
  %s6 = inlined_call_operand.vmem [shape: f32[1,32], index: 6, kind: input, shape index: {}]
  %s7 = inlined_call_operand.hbm [shape: bf16[2,4,8,8], index: 7, kind: output, shape index: {0}]
  %s8 = inlined_call_operand.hbm [shape: bf16[2,8,32], index: 8, kind: output, shape index: {1}]
  %9 = xla_tuple %s7, %s8
  %s10 = sld [smem:[#allocation0]]
  $region81: #{tpu_custom_call.1} parent=0
    _
  %s12 = ssub.s32 1, %s10
  %s13 = scalar_select 0, %s12, %s10
  $region1: #{tpu_custom_call.1} parent=0
    #allocation2 [shape = 'u8[8192]{0}', space=vmem, size = 0x2000, scoped, tag = 'input window, operand 0']
    #allocation3 [shape = 's32[2]{0}', space=sflag, size = 0x8, scoped, tag = 'scoped memory for tpu_custom_call.1']
    #allocation4 [shape = 's32[2]{0}', space=sflag, size = 0x8, scoped, tag = 'scoped memory for tpu_custom_call.1']
    #allocation5 [shape = 'u8[8192]{0}', space=vmem, size = 0x2000, scoped, tag = 'input window, operand 3, single buffered']
    #allocation6 [shape = 's32[1]{0}', space=sflag, size = 0x4, scoped, tag = 'scoped memory for tpu_custom_call.1']
    #allocation7 [shape = 'u8[8192]{0}', space=vmem, size = 0x2000, scoped, tag = 'input window, operand 5, single buffered']
    #allocation8 [shape = 'u8[16384]{0}', space=vmem, size = 0x4000, scoped, tag = 'output window, operand 0']
    #allocation9 [shape = 'u8[4096]{0}', space=vmem, size = 0x1000, scoped, tag = 'output window, operand 1']
    #allocation10 [shape = 's32[2]{0}', space=sflag, size = 0x8, scoped, tag = 'scoped memory for tpu_custom_call.1']
    %14 = vsyncpa [#allocation3], 0
    %s15 = scalar_lea.sflag [#allocation3], 1
    %16 = vsyncpa %s15, 0
    %17 = vsyncpa [#allocation6], 0
    %18 = vsyncpa [#allocation4], 0
    %s19 = scalar_lea.sflag [#allocation4], 1
    %20 = vsyncpa %s19, 0
    %21 = vsyncpa [#allocation10], 0
    %s22 = scalar_lea.sflag [#allocation10], 1
    %23 = vsyncpa %s22, 0
    loop: start=0, step=1, limit=4
    $region2: #{tpu_custom_call.1} parent=1 // loop_pre_header
      _
    $region3: #{tpu_custom_call.1} parent=1 // loop_header
      %s25 = sphi 0, %s29
      %p26 = scmp.ge.s32.totalorder %s25, 4
      %s32 = sphi 0, %s44
      %s33 = sphi 0, %s40
      %s34 = sphi 0, %s32
      %s35 = sphi 0, %s33
      %s36 = sphi 0, %s34
      %s37 = sphi 0, %s35
      %s49 = sphi 0, %s51
      %s52 = sphi 0, %s49
      %s53 = sphi 0, %s52
      %s69 = sphi 0, %s53
      %s73 = sphi 0, %s73
      %s75 = sphi 0, %s73
      %s76 = sphi 0, %s75
      %s90 = sphi 0, %s76
      %s94 = sphi 0, %s94
      %s96 = sphi 0, %s94
      %s97 = sphi 0, %s96
      %s111 = sphi 0, %s97
      %s115 = sphi 0, %s115
      %s117 = sphi 0, %s115
      %s118 = sphi 0, %s117
      %s132 = sphi 0, %s118
      %s136 = sphi 0, %s136
      %s138 = sphi 0, %s136
      %s139 = sphi 0, %s138
      %s153 = sphi 0, %s139
      %s157 = sphi 0, %s157
      %s159 = sphi 0, %s157
      %s160 = sphi 0, %s159
      %s174 = sphi 0, %s160
      %s178 = sphi 0, %s178
      %s180 = sphi 0, %s178
      %s181 = sphi 0, %s180
      %s195 = sphi 0, %s181
      %s203 = sphi 0, %s205
      %s206 = sphi 0, %s203
      %s207 = sphi 0, %s206
      %s223 = sphi 0, %s207
      %s231 = sphi 0, %s233
      %s234 = sphi 0, %s231
      %s235 = sphi 0, %s234
      %s251 = sphi 0, %s235
    $region4: #{tpu_custom_call.1} parent=1 // loop_header_branch
      %28 = sbr.rel (%p26) target = $region8
    $region5: #{tpu_custom_call.1} parent=1 // loop_body
      %s30 = ssub.s32 %s25, 1
      %s31 = ssub.s32 %s25, 2
      %s38 = sadd.s32 1, %s33
      %p39 = scmp.ge.s32.totalorder %s38, 1
      %s40 = scalar_select %p39, 0, %s38
      %s41 = sadd.s32 1, %s32
      %s42 = scalar_select %p39, %s41, %s32
      %p43 = scmp.ge.s32.totalorder %s42, 2
      %s44 = scalar_select %p43, 0, %s42
      %s45 = ssub.s32 %s32, %s44
      %s46 = ssub.s32 %s33, %s40
      %s47 = sor.u32 %s45, %s46
      %p48 = scmp.eq.s32.totalorder %s47, 0
      %s50 = sadd.s32 %s49, 1
      %s51 = scalar_select %p48, %s49, %s50
      %p54 = pneg %p48
      %p55 = scmp.eq.s32.totalorder %s25, 1
      %p56 = por %p54, %p55
      %p57 = scmp.ne.s32.totalorder %s49, %s52
      %p58 = scmp.eq.s32.totalorder %s25, 0
      %p59 = por %p57, %p58
      %p60 = scmp.ne.s32.totalorder %s49, %s52
      %p61 = scmp.eq.s32.totalorder %s30, 1
      %p62 = por %p60, %p61
      %p63 = scmp.ne.s32.totalorder %s52, %s53
      %p64 = scmp.eq.s32.totalorder %s30, 0
      %p65 = por %p63, %p64
      %p66 = scmp.ne.s32.totalorder %s52, %s53
      %p67 = scmp.eq.s32.totalorder %s31, 1
      %p68 = por %p66, %p67
      %p70 = scmp.ne.s32.totalorder %s53, %s69
      %p71 = scmp.eq.s32.totalorder %s31, 0
      %p72 = por %p70, %p71
      %s74 = sadd.s32 %s73, 1
      %p77 = scmp.eq.s32.totalorder %s25, 1
      %p78 = scmp.ne.s32.totalorder %s73, %s75
      %p79 = scmp.eq.s32.totalorder %s25, 0
      %p80 = por %p78, %p79
      %p81 = scmp.ne.s32.totalorder %s73, %s75
      %p82 = scmp.eq.s32.totalorder %s30, 1
      %p83 = por %p81, %p82
      %p84 = scmp.ne.s32.totalorder %s75, %s76
      %p85 = scmp.eq.s32.totalorder %s30, 0
      %p86 = por %p84, %p85
      %p87 = scmp.ne.s32.totalorder %s75, %s76
      %p88 = scmp.eq.s32.totalorder %s31, 1
      %p89 = por %p87, %p88
      %p91 = scmp.ne.s32.totalorder %s76, %s90
      %p92 = scmp.eq.s32.totalorder %s31, 0
      %p93 = por %p91, %p92
      %s95 = sadd.s32 %s94, 1
      %p98 = scmp.eq.s32.totalorder %s25, 1
      %p99 = scmp.ne.s32.totalorder %s94, %s96
      %p100 = scmp.eq.s32.totalorder %s25, 0
      %p101 = por %p99, %p100
      %p102 = scmp.ne.s32.totalorder %s94, %s96
      %p103 = scmp.eq.s32.totalorder %s30, 1
      %p104 = por %p102, %p103
      %p105 = scmp.ne.s32.totalorder %s96, %s97
      %p106 = scmp.eq.s32.totalorder %s30, 0
      %p107 = por %p105, %p106
      %p108 = scmp.ne.s32.totalorder %s96, %s97
      %p109 = scmp.eq.s32.totalorder %s31, 1
      %p110 = por %p108, %p109
      %p112 = scmp.ne.s32.totalorder %s97, %s111
      %p113 = scmp.eq.s32.totalorder %s31, 0
      %p114 = por %p112, %p113
      %s116 = sadd.s32 %s115, 1
      %p119 = scmp.eq.s32.totalorder %s25, 1
      %p120 = scmp.ne.s32.totalorder %s115, %s117
      %p121 = scmp.eq.s32.totalorder %s25, 0
      %p122 = por %p120, %p121
      %p123 = scmp.ne.s32.totalorder %s115, %s117
      %p124 = scmp.eq.s32.totalorder %s30, 1
      %p125 = por %p123, %p124
      %p126 = scmp.ne.s32.totalorder %s117, %s118
      %p127 = scmp.eq.s32.totalorder %s30, 0
      %p128 = por %p126, %p127
      %p129 = scmp.ne.s32.totalorder %s117, %s118
      %p130 = scmp.eq.s32.totalorder %s31, 1
      %p131 = por %p129, %p130
      %p133 = scmp.ne.s32.totalorder %s118, %s132
      %p134 = scmp.eq.s32.totalorder %s31, 0
      %p135 = por %p133, %p134
      %s137 = sadd.s32 %s136, 1
      %p140 = scmp.eq.s32.totalorder %s25, 1
      %p141 = scmp.ne.s32.totalorder %s136, %s138
      %p142 = scmp.eq.s32.totalorder %s25, 0
      %p143 = por %p141, %p142
      %p144 = scmp.ne.s32.totalorder %s136, %s138
      %p145 = scmp.eq.s32.totalorder %s30, 1
      %p146 = por %p144, %p145
      %p147 = scmp.ne.s32.totalorder %s138, %s139
      %p148 = scmp.eq.s32.totalorder %s30, 0
      %p149 = por %p147, %p148
      %p150 = scmp.ne.s32.totalorder %s138, %s139
      %p151 = scmp.eq.s32.totalorder %s31, 1
      %p152 = por %p150, %p151
      %p154 = scmp.ne.s32.totalorder %s139, %s153
      %p155 = scmp.eq.s32.totalorder %s31, 0
      %p156 = por %p154, %p155
      %s158 = sadd.s32 %s157, 1
      %p161 = scmp.eq.s32.totalorder %s25, 1
      %p162 = scmp.ne.s32.totalorder %s157, %s159
      %p163 = scmp.eq.s32.totalorder %s25, 0
      %p164 = por %p162, %p163
      %p165 = scmp.ne.s32.totalorder %s157, %s159
      %p166 = scmp.eq.s32.totalorder %s30, 1
      %p167 = por %p165, %p166
      %p168 = scmp.ne.s32.totalorder %s159, %s160
      %p169 = scmp.eq.s32.totalorder %s30, 0
      %p170 = por %p168, %p169
      %p171 = scmp.ne.s32.totalorder %s159, %s160
      %p172 = scmp.eq.s32.totalorder %s31, 1
      %p173 = por %p171, %p172
      %p175 = scmp.ne.s32.totalorder %s160, %s174
      %p176 = scmp.eq.s32.totalorder %s31, 0
      %p177 = por %p175, %p176
      %s179 = sadd.s32 %s178, 1
      %p182 = scmp.eq.s32.totalorder %s25, 1
      %p183 = scmp.ne.s32.totalorder %s178, %s180
      %p184 = scmp.eq.s32.totalorder %s25, 0
      %p185 = por %p183, %p184
      %p186 = scmp.ne.s32.totalorder %s178, %s180
      %p187 = scmp.eq.s32.totalorder %s30, 1
      %p188 = por %p186, %p187
      %p189 = scmp.ne.s32.totalorder %s180, %s181
      %p190 = scmp.eq.s32.totalorder %s30, 0
      %p191 = por %p189, %p190
      %p192 = scmp.ne.s32.totalorder %s180, %s181
      %p193 = scmp.eq.s32.totalorder %s31, 1
      %p194 = por %p192, %p193
      %p196 = scmp.ne.s32.totalorder %s181, %s195
      %p197 = scmp.eq.s32.totalorder %s31, 0
      %p198 = por %p196, %p197
      %s199 = ssub.s32 %s32, %s44
      %s200 = ssub.s32 %s33, %s40
      %s201 = sor.u32 %s199, %s200
      %p202 = scmp.eq.s32.totalorder %s201, 0
      %s204 = sadd.s32 %s203, 1
      %s205 = scalar_select %p202, %s203, %s204
      %p208 = pneg %p202
      %p209 = scmp.eq.s32.totalorder %s25, 1
      %p210 = por %p208, %p209
      %p211 = scmp.ne.s32.totalorder %s203, %s206
      %p212 = scmp.eq.s32.totalorder %s25, 0
      %p213 = por %p211, %p212
      %p214 = scmp.ne.s32.totalorder %s203, %s206
      %p215 = scmp.eq.s32.totalorder %s30, 1
      %p216 = por %p214, %p215
      %p217 = scmp.ne.s32.totalorder %s206, %s207
      %p218 = scmp.eq.s32.totalorder %s30, 0
      %p219 = por %p217, %p218
      %p220 = scmp.ne.s32.totalorder %s206, %s207
      %p221 = scmp.eq.s32.totalorder %s31, 1
      %p222 = por %p220, %p221
      %p224 = scmp.ne.s32.totalorder %s207, %s223
      %p225 = scmp.eq.s32.totalorder %s31, 0
      %p226 = por %p224, %p225
      %s227 = ssub.s32 %s32, %s44
      %s228 = ssub.s32 %s33, %s40
      %s229 = sor.u32 %s227, %s228
      %p230 = scmp.eq.s32.totalorder %s229, 0
      %s232 = sadd.s32 %s231, 1
      %s233 = scalar_select %p230, %s231, %s232
      %p236 = pneg %p230
      %p237 = scmp.eq.s32.totalorder %s25, 1
      %p238 = por %p236, %p237
      %p239 = scmp.ne.s32.totalorder %s231, %s234
      %p240 = scmp.eq.s32.totalorder %s25, 0
      %p241 = por %p239, %p240
      %p242 = scmp.ne.s32.totalorder %s231, %s234
      %p243 = scmp.eq.s32.totalorder %s30, 1
      %p244 = por %p242, %p243
      %p245 = scmp.ne.s32.totalorder %s234, %s235
      %p246 = scmp.eq.s32.totalorder %s30, 0
      %p247 = por %p245, %p246
      %p248 = scmp.ne.s32.totalorder %s234, %s235
      %p249 = scmp.eq.s32.totalorder %s31, 1
      %p250 = por %p248, %p249
      %p252 = scmp.ne.s32.totalorder %s235, %s251
      %p253 = scmp.eq.s32.totalorder %s31, 0
      %p254 = por %p252, %p253
      %p255 = scmp.le.s32.totalorder 1, %s25
      %p256 = scmp.lt.s32.totalorder %s25, 3
      %p257 = pnand %p255, %p256
      %p258 = pneg %p257
      // Predicated region
      $region9: #{tpu_custom_call.1} parent=5 // pred_check
        _
      $region10: #{tpu_custom_call.1} parent=5 // pred_check_branch
        %260 = sbr.rel (%p257) target = $region12
      $region11: #{tpu_custom_call.1} parent=5 // pred_region
        %s261 = ssub.s32 %s25, 1
        // Predicated region
        $region13: #{tpu_custom_call.1} parent=11 // pred_check
          %p262 = pneg %p86
        $region14: #{tpu_custom_call.1} parent=11 // pred_check_branch
          %264 = sbr.rel (%p262) target = $region16
        $region15: #{tpu_custom_call.1} parent=11 // pred_region
          _
        $region16: #{tpu_custom_call.1} parent=11 // pred_fallthru
          _
        // Predicated region
        $region17: #{tpu_custom_call.1} parent=11 // pred_check
          %p265 = pneg %p107
        $region18: #{tpu_custom_call.1} parent=11 // pred_check_branch
          %267 = sbr.rel (%p265) target = $region20
        $region19: #{tpu_custom_call.1} parent=11 // pred_region
          _
        $region20: #{tpu_custom_call.1} parent=11 // pred_fallthru
          _
        // Predicated region
        $region21: #{tpu_custom_call.1} parent=11 // pred_check
          %p268 = pneg %p128
        $region22: #{tpu_custom_call.1} parent=11 // pred_check_branch
          %270 = sbr.rel (%p268) target = $region24
        $region23: #{tpu_custom_call.1} parent=11 // pred_region
          %s272 = ssub.s32 256, 256
          %273 = vsyncadd [#allocation6], %s272
          %s274 = sshll.u32 [#allocation5], 4
          %s275 = int_to_ptr.vmem [resolvable:$true] %s274
          %280 = dma.hbm_to_vmem [thread:$0]  %s3, 256, %s275, [#allocation6], 64, 64, 4
        $region24: #{tpu_custom_call.1} parent=11 // pred_fallthru
          _
        // Predicated region
        $region25: #{tpu_custom_call.1} parent=11 // pred_check
          %p281 = pneg %p149
        $region26: #{tpu_custom_call.1} parent=11 // pred_check_branch
          %283 = sbr.rel (%p281) target = $region28
        $region27: #{tpu_custom_call.1} parent=11 // pred_region
          _
        $region28: #{tpu_custom_call.1} parent=11 // pred_fallthru
          _
        // Predicated region
        $region29: #{tpu_custom_call.1} parent=11 // pred_check
          %p284 = pneg %p170
        $region30: #{tpu_custom_call.1} parent=11 // pred_check_branch
          %286 = sbr.rel (%p284) target = $region32
        $region31: #{tpu_custom_call.1} parent=11 // pred_region
          %s288 = ssub.s32 256, 256
          %289 = vsyncadd [#allocation6], %s288
          %s290 = sshll.u32 [#allocation7], 4
          %s291 = int_to_ptr.vmem [resolvable:$true] %s290
          %296 = dma.hbm_to_vmem [thread:$0]  %s5, 256, %s291, [#allocation6], 64, 64, 4
        $region32: #{tpu_custom_call.1} parent=11 // pred_fallthru
          _
        // Predicated region
        $region33: #{tpu_custom_call.1} parent=11 // pred_check
          %p297 = pneg %p191
        $region34: #{tpu_custom_call.1} parent=11 // pred_check_branch
          %299 = sbr.rel (%p297) target = $region36
        $region35: #{tpu_custom_call.1} parent=11 // pred_region
          _
        $region36: #{tpu_custom_call.1} parent=11 // pred_fallthru
          _
      $region12: #{tpu_custom_call.1} parent=5 // pred_fallthru
        _
      %p300 = scmp.lt.s32.totalorder %s25, 2
      // Predicated region
      $region37: #{tpu_custom_call.1} parent=5 // pred_check
        %p301 = pneg %p300
      $region38: #{tpu_custom_call.1} parent=5 // pred_check_branch
        %303 = sbr.rel (%p301) target = $region40
      $region39: #{tpu_custom_call.1} parent=5 // pred_region
        // Predicated region
        $region41: #{tpu_custom_call.1} parent=39 // pred_check
          %p304 = pneg %p59
        $region42: #{tpu_custom_call.1} parent=39 // pred_check_branch
          %306 = sbr.rel (%p304) target = $region44
        $region43: #{tpu_custom_call.1} parent=39 // pred_region
          %s307 = sand.u32 %s49, 1
          %s308 = scalar_lea.sflag [#allocation3], %s307
          %s309 = sand.u32 %s49, 1
          %s310 = smul.addr %s309, 8
          %s311 = scalar_lea.vmem [#allocation2], %s310
          %s313 = ssub.s32 128, 128
          %314 = vsyncadd %s308, %s313
          %s315 = sadd.s32 %s33, %s32
          %s316 = smul.addr %s315, 128
          %s317 = scalar_lea.hbm %s0, %s316
          %s319 = sshll.u32 %s311, 4
          %s320 = int_to_ptr.vmem [resolvable:$true] %s319
          %322 = dma.hbm_to_vmem [thread:$0]  %s317, 128, %s320, %s308
        $region44: #{tpu_custom_call.1} parent=39 // pred_fallthru
          _
      $region40: #{tpu_custom_call.1} parent=5 // pred_fallthru
        _
      %p323 = scmp.le.s32.totalorder 1, %s25
      %p324 = scmp.lt.s32.totalorder %s25, 3
      %p325 = pnand %p323, %p324
      %p326 = pneg %p325
      // Predicated region
      $region45: #{tpu_custom_call.1} parent=5 // pred_check
        _
      $region46: #{tpu_custom_call.1} parent=5 // pred_check_branch
        %328 = sbr.rel (%p325) target = $region48
      $region47: #{tpu_custom_call.1} parent=5 // pred_region
        %s329 = ssub.s32 %s25, 1
        %s330 = sand.u32 %s52, 1
        %s331 = scalar_lea.sflag [#allocation3], %s330
        %s332 = sand.u32 %s52, 1
        %s333 = smul.addr %s332, 8
        %s334 = scalar_lea.vmem [#allocation2], %s333
        // Predicated region
        $region49: #{tpu_custom_call.1} parent=47 // pred_check
          %p335 = pneg %p65
        $region50: #{tpu_custom_call.1} parent=47 // pred_check_branch
          %337 = sbr.rel (%p335) target = $region52
        $region51: #{tpu_custom_call.1} parent=47 // pred_region
          %338 = dma.done %s331, 128
        $region52: #{tpu_custom_call.1} parent=47 // pred_fallthru
          _
        // Predicated region
        $region53: #{tpu_custom_call.1} parent=47 // pred_check
          %p339 = pneg %p128
        $region54: #{tpu_custom_call.1} parent=47 // pred_check_branch
          %341 = sbr.rel (%p339) target = $region56
        $region55: #{tpu_custom_call.1} parent=47 // pred_region
          %342 = dma.done [#allocation6], 256
        $region56: #{tpu_custom_call.1} parent=47 // pred_fallthru
          _
        // Predicated region
        $region57: #{tpu_custom_call.1} parent=47 // pred_check
          %p343 = pneg %p170
        $region58: #{tpu_custom_call.1} parent=47 // pred_check_branch
          %345 = sbr.rel (%p343) target = $region60
        $region59: #{tpu_custom_call.1} parent=47 // pred_region
          %346 = dma.done [#allocation6], 256
        $region60: #{tpu_custom_call.1} parent=47 // pred_fallthru
          _
        %s347 = sand.u32 %s52, 1
        %s348 = scalar_lea.sflag [#allocation3], %s347
        %s349 = sand.u32 %s52, 1
        %s350 = smul.addr %s349, 8
        %s351 = scalar_lea.vmem [#allocation2], %s350
        %p352 = pneg %p65
        %p353 = pneg %p62
        %p354 = pneg %p86
        %p355 = pneg %p83
        %p356 = pneg %p107
        %p357 = pneg %p104
        %p358 = pneg %p128
        %p359 = pneg %p125
        %p360 = pneg %p149
        %p361 = pneg %p146
        %p362 = pneg %p170
        %p363 = pneg %p167
        %p364 = pneg %p191
        %p365 = pneg %p188
        %p366 = pneg %p219
        %p367 = pneg %p216
        %s368 = sand.u32 %s206, 1
        %s369 = scalar_lea.sflag [#allocation4], %s368
        %s370 = sand.u32 %s206, 1
        %s371 = smul.addr %s370, 16
        %s372 = scalar_lea.vmem [#allocation8], %s371
        %p373 = pneg %p247
        %p374 = pneg %p244
        %s375 = sand.u32 %s234, 1
        %s376 = scalar_lea.sflag [#allocation10], %s375
        %s377 = sand.u32 %s234, 1
        %s378 = smul.addr %s377, 4
        %s379 = scalar_lea.vmem [#allocation9], %s378
        %v381 = vld [vmem:[%s334] sm:$0xff]
        %v382 = vld [vmem:[%s1] sm:$0x1]
        %v383 = vld [vmem:[%s2] sm:$0x1]
        %vm384 = vcmask 261120
        %v385 = vsel %vm384, %v381, 0.0
        %386 = vadd.xlane.f32.xlu0 %v385
        %v387 = vpop.xlane.xlu0 %386
        %v388 = vrcp.pop 32.0
        %v389 = vmul.f32 %v387, %v388
        %v390 = vsub.f32 %v381, %v389
        %v391 = vmul.f32 %v390, %v390
        %v392 = vsel %vm384, %v391, 0.0
        %393 = vadd.xlane.f32.xlu0 %v392
        %v394 = vpop.xlane.xlu0 %393
        %v395 = vmul.f32 %v394, %v388
        %v396 = vadd.f32 %v395, 1e-05
        %v397 = vrsqrt.pop %v396
        %v398 = vmul.f32 %v390, %v397
        %v400 = vlaneseq
        %v401 = vshrl.u32 %v400, 7
        %v402 = vsub.s32 0, %v401
        %v403 = vrot.slane %v382, %v402
        %v405 = vmul.f32 %v398, %v403
        %v407 = vlaneseq
        %v408 = vshrl.u32 %v407, 7
        %v409 = vsub.s32 0, %v408
        %v410 = vrot.slane %v383, %v409
        %v412 = vadd.f32 %v405, %v410
        %v413 = vpack.c.bf16 %v412, %v412
        %v414 = vld [vmem:[#allocation5] sm:$0xf]
        %v415 = vld [vmem:[#allocation5 + $0x4] sm:$0xf]
        %v416 = vld [vmem:[#allocation5 + $0x8] sm:$0xf]
        %v417 = vld [vmem:[#allocation5 + $0xc] sm:$0xf]
        %v418 = vld [vmem:[%s4] sm:$0x1]
        %v420 = vlaneseq
        %v421 = vshrl.u32 %v420, 7
        %v422 = vsub.s32 0, %v421
        %v423 = vrot.slane %v418, %v422
        %v429 = vunpack.c.l.b16 %v414
        %v430 = vunpack.c.l.b16 %v415
        %v431 = vunpack.c.l.b16 %v416
        %v432 = vunpack.c.l.b16 %v417
        %v433 = vpack.c.b16 %v430, %v429
        %v434 = vpack.c.b16 %v432, %v431
        %v438 = vsel %vm384, %v413, 0
        %440 = vmatprep.subr.bf16.mxu0 0
        %441 = vmatpush1.bf16.msra.mxu0 0
        %442 = vmatprep.subr.bf16.mxu0 0
        %443 = vmatpush1.bf16.msra.mxu0 0
        %444 = vmatprep.subr.bf16.mxu0 0
        %445 = vmatpush1.bf16.msra.mxu0 0
        %446 = vmatprep.subr.bf16.mxu0 0
        %447 = vmatpush1.bf16.msra.mxu0 0
        %448 = vmatprep.subr.bf16.mxu0 0
        %449 = vmatpush1.bf16.msra.mxu0 0
        %450 = vmatprep.subr.bf16.mxu0 0
        %451 = vmatpush1.bf16.msra.mxu0 0
        %452 = vmatprep.subr.bf16.mxu0 0
        %453 = vmatpush1.bf16.msra.mxu0 %v434
        %454 = vmatprep.subr.bf16.mxu0 0
        %455 = vmatpush1.bf16.msra.mxu0 %v433
        %456 = vmatprep.subr.bf16.mxu0 0
        %457 = vmatpush2.bf16.msra.mxu0 0
        %458 = vmatprep.subr.bf16.mxu0 0
        %459 = vmatpush2.bf16.msra.mxu0 0
        %460 = vmatprep.subr.bf16.mxu0 0
        %461 = vmatpush2.bf16.msra.mxu0 0
        %462 = vmatprep.subr.bf16.mxu0 0
        %463 = vmatpush2.bf16.msra.mxu0 0
        %464 = vmatprep.subr.bf16.mxu0 0
        %465 = vmatpush2.bf16.msra.mxu0 0
        %466 = vmatprep.subr.bf16.mxu0 0
        %467 = vmatpush2.bf16.msra.mxu0 0
        %468 = vmatprep.subr.bf16.mxu0 0
        %469 = vmatpush2.bf16.msra.mxu0 0
        %470 = vmatprep.subr.bf16.mxu0 0
        %471 = vmatpush2.bf16.msra.mxu0 0
        %472 = vmatprep.mubr.bf16.mxu0 0
        %473 = vmatmul.mubr.bf16.gmra.mxu0 %v438
        %v474 = vpop.f32.mrf.mxu0
        %v475 = vadd.f32 %v423, %v474
        %v476 = vpop.f32.mrf.mxu0
        %v477 = vpop.f32.mrf.mxu0
        %v478 = vpop.f32.mrf.mxu0
        %479 = vdwg.mxu0
        %v480 = vld [vmem:[#allocation7] sm:$0xf]
        %v481 = vld [vmem:[#allocation7 + $0x4] sm:$0xf]
        %v482 = vld [vmem:[#allocation7 + $0x8] sm:$0xf]
        %v483 = vld [vmem:[#allocation7 + $0xc] sm:$0xf]
        %v484 = vld [vmem:[%s6] sm:$0x1]
        %v486 = vlaneseq
        %v487 = vshrl.u32 %v486, 7
        %v488 = vsub.s32 0, %v487
        %v489 = vrot.slane %v484, %v488
        %v495 = vunpack.c.l.b16 %v480
        %v496 = vunpack.c.l.b16 %v481
        %v497 = vunpack.c.l.b16 %v482
        %v498 = vunpack.c.l.b16 %v483
        %v499 = vpack.c.b16 %v496, %v495
        %v500 = vpack.c.b16 %v498, %v497
        %503 = vmatprep.subr.bf16.mxu0 0
        %504 = vmatpush1.bf16.msra.mxu0 0
        %505 = vmatprep.subr.bf16.mxu0 0
        %506 = vmatpush1.bf16.msra.mxu0 0
        %507 = vmatprep.subr.bf16.mxu0 0
        %508 = vmatpush1.bf16.msra.mxu0 0
        %509 = vmatprep.subr.bf16.mxu0 0
        %510 = vmatpush1.bf16.msra.mxu0 0
        %511 = vmatprep.subr.bf16.mxu0 0
        %512 = vmatpush1.bf16.msra.mxu0 0
        %513 = vmatprep.subr.bf16.mxu0 0
        %514 = vmatpush1.bf16.msra.mxu0 0
        %515 = vmatprep.subr.bf16.mxu0 0
        %516 = vmatpush1.bf16.msra.mxu0 %v500
        %517 = vmatprep.subr.bf16.mxu0 0
        %518 = vmatpush1.bf16.msra.mxu0 %v499
        %519 = vmatprep.subr.bf16.mxu0 0
        %520 = vmatpush2.bf16.msra.mxu0 0
        %521 = vmatprep.subr.bf16.mxu0 0
        %522 = vmatpush2.bf16.msra.mxu0 0
        %523 = vmatprep.subr.bf16.mxu0 0
        %524 = vmatpush2.bf16.msra.mxu0 0
        %525 = vmatprep.subr.bf16.mxu0 0
        %526 = vmatpush2.bf16.msra.mxu0 0
        %527 = vmatprep.subr.bf16.mxu0 0
        %528 = vmatpush2.bf16.msra.mxu0 0
        %529 = vmatprep.subr.bf16.mxu0 0
        %530 = vmatpush2.bf16.msra.mxu0 0
        %531 = vmatprep.subr.bf16.mxu0 0
        %532 = vmatpush2.bf16.msra.mxu0 0
        %533 = vmatprep.subr.bf16.mxu0 0
        %534 = vmatpush2.bf16.msra.mxu0 0
        %535 = vmatprep.mubr.bf16.mxu0 0
        %536 = vmatmul.mubr.bf16.gmra.mxu0 %v438
        %v537 = vpop.f32.mrf.mxu0
        %v538 = vadd.f32 %v489, %v537
        %v539 = vpop.f32.mrf.mxu0
        %v540 = vpop.f32.mrf.mxu0
        %v541 = vpop.f32.mrf.mxu0
        %542 = vdwg.mxu0
        %v543 = vpack.c.bf16 %v538, %v538
        %vm544 = vcmask 257024
        %545 = vst.msk [vmem:[%s379] sm:$0xf] %vm544, %v543
        %546 = vxpose.xlu0.b32.start [1/16] %v475, 128
        %547 = vxpose.xlu0.b32.cont [2/16] 0.0, 128
        %548 = vxpose.xlu0.b32.cont [3/16] 0.0, 128
        %549 = vxpose.xlu0.b32.cont [4/16] 0.0, 128
        %550 = vxpose.xlu0.b32.cont [5/16] 0.0, 128
        %551 = vxpose.xlu0.b32.cont [6/16] 0.0, 128
        %552 = vxpose.xlu0.b32.cont [7/16] 0.0, 128
        %553 = vxpose.xlu0.b32.cont [8/16] 0.0, 128
        %554 = vxpose.xlu0.b32.cont [9/16] 0.0, 128
        %555 = vxpose.xlu0.b32.cont [10/16] 0.0, 128
        %556 = vxpose.xlu0.b32.cont [11/16] 0.0, 128
        %557 = vxpose.xlu0.b32.cont [12/16] 0.0, 128
        %558 = vxpose.xlu0.b32.cont [13/16] 0.0, 128
        %559 = vxpose.xlu0.b32.cont [14/16] 0.0, 128
        %560 = vxpose.xlu0.b32.cont [15/16] 0.0, 128
        %561 = vxpose.xlu0.b32.end [16/16] 0.0, 128
        %v562 = vpop.trf.xlu0
        %v563 = vpop.trf.xlu0
        %v564 = vpop.trf.xlu0
        %v565 = vpop.trf.xlu0
        %v566 = vpop.trf.xlu0
        %v567 = vpop.trf.xlu0
        %v568 = vpop.trf.xlu0
        %v569 = vpop.trf.xlu0
        %v570 = vpop.trf.xlu0
        %v571 = vpop.trf.xlu0
        %v572 = vpop.trf.xlu0
        %v573 = vpop.trf.xlu0
        %v574 = vpop.trf.xlu0
        %v575 = vpop.trf.xlu0
        %v576 = vpop.trf.xlu0
        %v577 = vpop.trf.xlu0
        %v578 = vpack.c.bf16 %v562, %v562
        %vm579 = vcmask 60416
        %580 = vst.msk [vmem:[%s372] sm:$0xf] %vm579, %v578
        %v581 = vpack.c.bf16 %v563, %v563
        %s582 = scalar_lea.vmem %s372, 4 [#allocation8]
        %583 = vst.msk [vmem:[%s582] sm:$0xf] %vm579, %v581
        %v584 = vpack.c.bf16 %v564, %v564
        %s585 = scalar_lea.vmem %s372, 8 [#allocation8]
        %586 = vst.msk [vmem:[%s585] sm:$0xf] %vm579, %v584
        %v587 = vpack.c.bf16 %v565, %v565
        %s588 = scalar_lea.vmem %s372, 12 [#allocation8]
        %589 = vst.msk [vmem:[%s588] sm:$0xf] %vm579, %v587
        %s590 = sand.u32 %s206, 1
        %s591 = scalar_lea.sflag [#allocation4], %s590
        %s592 = sand.u32 %s206, 1
        %s593 = smul.addr %s592, 16
        %s594 = scalar_lea.vmem [#allocation8], %s593
        %s595 = sand.u32 %s234, 1
        %s596 = scalar_lea.sflag [#allocation10], %s595
        %s597 = sand.u32 %s234, 1
        %s598 = smul.addr %s597, 4
        %s599 = scalar_lea.vmem [#allocation9], %s598
        // Predicated region
        $region61: #{tpu_custom_call.1} parent=47 // pred_check
          %p600 = pneg %p216
        $region62: #{tpu_custom_call.1} parent=47 // pred_check_branch
          %602 = sbr.rel (%p600) target = $region64
        $region63: #{tpu_custom_call.1} parent=47 // pred_region
          %s604 = ssub.s32 256, 256
          %605 = vsyncadd %s591, %s604
          %s606 = smul.addr %s34, 4
          %s607 = sadd.s32 %s35, %s606
          %s608 = smul.addr %s607, 64
          %s609 = scalar_lea.hbm %s7, %s608
          %s610 = sshll.u32 %s594, 4
          %s611 = int_to_ptr.vmem [resolvable:$true] %s610
          %616 = dma.vmem_to_hbm [thread:$0]  %s611, 256, %s609, %s591, 64, 64, 4
        $region64: #{tpu_custom_call.1} parent=47 // pred_fallthru
          _
        // Predicated region
        $region65: #{tpu_custom_call.1} parent=47 // pred_check
          %p617 = pneg %p244
        $region66: #{tpu_custom_call.1} parent=47 // pred_check_branch
          %619 = sbr.rel (%p617) target = $region68
        $region67: #{tpu_custom_call.1} parent=47 // pred_region
          %s621 = ssub.s32 64, 64
          %622 = vsyncadd %s596, %s621
          %s623 = sadd.s32 %s35, %s34
          %s624 = smul.addr %s623, 64
          %s625 = scalar_lea.hbm %s8, %s624
          %s627 = sshll.u32 %s599, 4
          %s628 = int_to_ptr.vmem [resolvable:$true] %s627
          %630 = dma.vmem_to_hbm [thread:$0]  %s628, 64, %s625, %s596
        $region68: #{tpu_custom_call.1} parent=47 // pred_fallthru
          _
      $region48: #{tpu_custom_call.1} parent=5 // pred_fallthru
        _
      %p631 = scmp.le.s32.totalorder 2, %s25
      // Predicated region
      $region69: #{tpu_custom_call.1} parent=5 // pred_check
        %p632 = pneg %p631
      $region70: #{tpu_custom_call.1} parent=5 // pred_check_branch
        %634 = sbr.rel (%p632) target = $region72
      $region71: #{tpu_custom_call.1} parent=5 // pred_region
        %s635 = ssub.s32 %s25, 2
        // Predicated region
        $region73: #{tpu_custom_call.1} parent=71 // pred_check
          %p636 = pneg %p222
        $region74: #{tpu_custom_call.1} parent=71 // pred_check_branch
          %638 = sbr.rel (%p636) target = $region76
        $region75: #{tpu_custom_call.1} parent=71 // pred_region
          %s639 = sand.u32 %s207, 1
          %s640 = scalar_lea.sflag [#allocation4], %s639
          %s641 = sand.u32 %s207, 1
          %s642 = smul.addr %s641, 16
          %s643 = scalar_lea.vmem [#allocation8], %s642
          %644 = dma.done %s640, 256
        $region76: #{tpu_custom_call.1} parent=71 // pred_fallthru
          _
        // Predicated region
        $region77: #{tpu_custom_call.1} parent=71 // pred_check
          %p645 = pneg %p250
        $region78: #{tpu_custom_call.1} parent=71 // pred_check_branch
          %647 = sbr.rel (%p645) target = $region80
        $region79: #{tpu_custom_call.1} parent=71 // pred_region
          %s648 = sand.u32 %s235, 1
          %s649 = scalar_lea.sflag [#allocation10], %s648
          %s650 = sand.u32 %s235, 1
          %s651 = smul.addr %s650, 4
          %s652 = scalar_lea.vmem [#allocation9], %s651
          %653 = dma.done %s649, 64
        $region80: #{tpu_custom_call.1} parent=71 // pred_fallthru
          _
      $region72: #{tpu_custom_call.1} parent=5 // pred_fallthru
        _
    $region6: #{tpu_custom_call.1} parent=1 // loop_footer
      %s29 = sadd.s32 1, %s25
    $region7: #{tpu_custom_call.1} parent=1 // loop_footer_branch
      %24 = sbr.rel target = $region3
    $region8: #{tpu_custom_call.1} parent=1 // loop_exit
      _
    %654 = vsyncpa [#allocation3], 1
    %s655 = scalar_lea.sflag [#allocation3], 1
    %656 = vsyncpa %s655, 1
    %657 = vsyncpa [#allocation6], 1
    %658 = vsyncpa [#allocation4], 1
    %s659 = scalar_lea.sflag [#allocation4], 1
    %660 = vsyncpa %s659, 1
    %661 = vsyncpa [#allocation10], 1
    %s662 = scalar_lea.sflag [#allocation10], 1
    %663 = vsyncpa %s662, 1

// kernel: tpu_custom_call.1
$region0: #{tpu_custom_call.1}
  #allocation0 [shape = 'u32[]', space=smem, size = 0x4, offset = 0x4, fixed_abs, tag = 'smem constant byte address 0x4 - core index']
  #allocation1 [shape = 'u32[144,128]{1,0:T(1,128)}', space=vmem, size = 0x12000, scoped, tag = 'internal scratch']
  %s0 = inlined_call_operand.hbm [shape: f32[2,8,32], index: 0, kind: input, shape index: {}]
  %s1 = inlined_call_operand.vmem [shape: f32[1,32], index: 1, kind: input, shape index: {}]
  %s2 = inlined_call_operand.vmem [shape: f32[1,32], index: 2, kind: input, shape index: {}]
  %s3 = inlined_call_operand.hbm [shape: bf16[32,32], index: 3, kind: input, shape index: {}]
  %s4 = inlined_call_operand.vmem [shape: f32[1,32], index: 4, kind: input, shape index: {}]
  %s5 = inlined_call_operand.hbm [shape: bf16[32,32], index: 5, kind: input, shape index: {}]
  %s6 = inlined_call_operand.vmem [shape: f32[1,32], index: 6, kind: input, shape index: {}]
  %s7 = inlined_call_operand.hbm [shape: bf16[2,4,8,8], index: 7, kind: output, shape index: {0}]
  %s8 = inlined_call_operand.hbm [shape: bf16[2,8,32], index: 8, kind: output, shape index: {1}]
  %9 = xla_tuple %s7, %s8
  %s10 = sld [smem:[#allocation0]]
  $region81: #{tpu_custom_call.1} parent=0
    _
  %s12 = ssub.s32 1, %s10
  %s13 = scalar_select 0, %s12, %s10
  $region1: #{tpu_custom_call.1} parent=0
    #allocation2 [shape = 'u8[8192]{0}', space=vmem, size = 0x2000, scoped, tag = 'input window, operand 0']
    #allocation3 [shape = 's32[2]{0}', space=sflag, size = 0x8, scoped, tag = 'scoped memory for tpu_custom_call.1']
    #allocation4 [shape = 's32[2]{0}', space=sflag, size = 0x8, scoped, tag = 'scoped memory for tpu_custom_call.1']
    #allocation5 [shape = 'u8[8192]{0}', space=vmem, size = 0x2000, scoped, tag = 'input window, operand 3, single buffered']
    #allocation6 [shape = 's32[1]{0}', space=sflag, size = 0x4, scoped, tag = 'scoped memory for tpu_custom_call.1']
    #allocation7 [shape = 'u8[8192]{0}', space=vmem, size = 0x2000, scoped, tag = 'input window, operand 5, single buffered']
    #allocation8 [shape = 'u8[16384]{0}', space=vmem, size = 0x4000, scoped, tag = 'output window, operand 0']
    #allocation9 [shape = 'u8[4096]{0}', space=vmem, size = 0x1000, scoped, tag = 'output window, operand 1']
    #allocation10 [shape = 's32[2]{0}', space=sflag, size = 0x8, scoped, tag = 'scoped memory for tpu_custom_call.1']
    %14 = vsyncpa [#allocation3], 0
    %s15 = scalar_lea.sflag [#allocation3], 1
    %16 = vsyncpa %s15, 0
    %17 = vsyncpa [#allocation6], 0
    %18 = vsyncpa [#allocation4], 0
    %s19 = scalar_lea.sflag [#allocation4], 1
    %20 = vsyncpa %s19, 0
    %21 = vsyncpa [#allocation10], 0
    %s22 = scalar_lea.sflag [#allocation10], 1
    %23 = vsyncpa %s22, 0
    loop: start=0, step=1, limit=4
    $region2: #{tpu_custom_call.1} parent=1 // loop_pre_header
      _
    $region3: #{tpu_custom_call.1} parent=1 // loop_header
      %s25 = sphi 0, %s29
      %p26 = scmp.ge.s32.totalorder %s25, 4
      %s32 = sphi 0, %s44
      %s33 = sphi 0, %s40
      %s34 = sphi 0, %s32
      %s35 = sphi 0, %s33
      %s36 = sphi 0, %s34
      %s37 = sphi 0, %s35
      %s49 = sphi 0, %s51
      %s52 = sphi 0, %s49
      %s53 = sphi 0, %s52
      %s69 = sphi 0, %s53
      %s73 = sphi 0, %s73
      %s75 = sphi 0, %s73
      %s76 = sphi 0, %s75
      %s90 = sphi 0, %s76
      %s94 = sphi 0, %s94
      %s96 = sphi 0, %s94
      %s97 = sphi 0, %s96
      %s111 = sphi 0, %s97
      %s115 = sphi 0, %s115
      %s117 = sphi 0, %s115
      %s118 = sphi 0, %s117
      %s132 = sphi 0, %s118
      %s136 = sphi 0, %s136
      %s138 = sphi 0, %s136
      %s139 = sphi 0, %s138
      %s153 = sphi 0, %s139
      %s157 = sphi 0, %s157
      %s159 = sphi 0, %s157
      %s160 = sphi 0, %s159
      %s174 = sphi 0, %s160
      %s178 = sphi 0, %s178
      %s180 = sphi 0, %s178
      %s181 = sphi 0, %s180
      %s195 = sphi 0, %s181
      %s203 = sphi 0, %s205
      %s206 = sphi 0, %s203
      %s207 = sphi 0, %s206
      %s223 = sphi 0, %s207
      %s231 = sphi 0, %s233
      %s234 = sphi 0, %s231
      %s235 = sphi 0, %s234
      %s251 = sphi 0, %s235
    $region4: #{tpu_custom_call.1} parent=1 // loop_header_branch
      %28 = sbr.rel (%p26) target = $region8
    $region5: #{tpu_custom_call.1} parent=1 // loop_body
      %s30 = ssub.s32 %s25, 1
      %s31 = ssub.s32 %s25, 2
      %s38 = sadd.s32 1, %s33
      %p39 = scmp.ge.s32.totalorder %s38, 1
      %s40 = scalar_select %p39, 0, %s38
      %s41 = sadd.s32 1, %s32
      %s42 = scalar_select %p39, %s41, %s32
      %p43 = scmp.ge.s32.totalorder %s42, 2
      %s44 = scalar_select %p43, 0, %s42
      %s45 = ssub.s32 %s32, %s44
      %s46 = ssub.s32 %s33, %s40
      %s47 = sor.u32 %s45, %s46
      %p48 = scmp.eq.s32.totalorder %s47, 0
      %s50 = sadd.s32 %s49, 1
      %s51 = scalar_select %p48, %s49, %s50
      %p54 = pneg %p48
      %p55 = scmp.eq.s32.totalorder %s25, 1
      %p56 = por %p54, %p55
      %p57 = scmp.ne.s32.totalorder %s49, %s52
      %p58 = scmp.eq.s32.totalorder %s25, 0
      %p59 = por %p57, %p58
      %p60 = scmp.ne.s32.totalorder %s49, %s52
      %p61 = scmp.eq.s32.totalorder %s30, 1
      %p62 = por %p60, %p61
      %p63 = scmp.ne.s32.totalorder %s52, %s53
      %p64 = scmp.eq.s32.totalorder %s30, 0
      %p65 = por %p63, %p64
      %p66 = scmp.ne.s32.totalorder %s52, %s53
      %p67 = scmp.eq.s32.totalorder %s31, 1
      %p68 = por %p66, %p67
      %p70 = scmp.ne.s32.totalorder %s53, %s69
      %p71 = scmp.eq.s32.totalorder %s31, 0
      %p72 = por %p70, %p71
      %s74 = sadd.s32 %s73, 1
      %p77 = scmp.eq.s32.totalorder %s25, 1
      %p78 = scmp.ne.s32.totalorder %s73, %s75
      %p79 = scmp.eq.s32.totalorder %s25, 0
      %p80 = por %p78, %p79
      %p81 = scmp.ne.s32.totalorder %s73, %s75
      %p82 = scmp.eq.s32.totalorder %s30, 1
      %p83 = por %p81, %p82
      %p84 = scmp.ne.s32.totalorder %s75, %s76
      %p85 = scmp.eq.s32.totalorder %s30, 0
      %p86 = por %p84, %p85
      %p87 = scmp.ne.s32.totalorder %s75, %s76
      %p88 = scmp.eq.s32.totalorder %s31, 1
      %p89 = por %p87, %p88
      %p91 = scmp.ne.s32.totalorder %s76, %s90
      %p92 = scmp.eq.s32.totalorder %s31, 0
      %p93 = por %p91, %p92
      %s95 = sadd.s32 %s94, 1
      %p98 = scmp.eq.s32.totalorder %s25, 1
      %p99 = scmp.ne.s32.totalorder %s94, %s96
      %p100 = scmp.eq.s32.totalorder %s25, 0
      %p101 = por %p99, %p100
      %p102 = scmp.ne.s32.totalorder %s94, %s96
      %p103 = scmp.eq.s32.totalorder %s30, 1
      %p104 = por %p102, %p103
      %p105 = scmp.ne.s32.totalorder %s96, %s97
      %p106 = scmp.eq.s32.totalorder %s30, 0
      %p107 = por %p105, %p106
      %p108 = scmp.ne.s32.totalorder %s96, %s97
      %p109 = scmp.eq.s32.totalorder %s31, 1
      %p110 = por %p108, %p109
      %p112 = scmp.ne.s32.totalorder %s97, %s111
      %p113 = scmp.eq.s32.totalorder %s31, 0
      %p114 = por %p112, %p113
      %s116 = sadd.s32 %s115, 1
      %p119 = scmp.eq.s32.totalorder %s25, 1
      %p120 = scmp.ne.s32.totalorder %s115, %s117
      %p121 = scmp.eq.s32.totalorder %s25, 0
      %p122 = por %p120, %p121
      %p123 = scmp.ne.s32.totalorder %s115, %s117
      %p124 = scmp.eq.s32.totalorder %s30, 1
      %p125 = por %p123, %p124
      %p126 = scmp.ne.s32.totalorder %s117, %s118
      %p127 = scmp.eq.s32.totalorder %s30, 0
      %p128 = por %p126, %p127
      %p129 = scmp.ne.s32.totalorder %s117, %s118
      %p130 = scmp.eq.s32.totalorder %s31, 1
      %p131 = por %p129, %p130
      %p133 = scmp.ne.s32.totalorder %s118, %s132
      %p134 = scmp.eq.s32.totalorder %s31, 0
      %p135 = por %p133, %p134
      %s137 = sadd.s32 %s136, 1
      %p140 = scmp.eq.s32.totalorder %s25, 1
      %p141 = scmp.ne.s32.totalorder %s136, %s138
      %p142 = scmp.eq.s32.totalorder %s25, 0
      %p143 = por %p141, %p142
      %p144 = scmp.ne.s32.totalorder %s136, %s138
      %p145 = scmp.eq.s32.totalorder %s30, 1
      %p146 = por %p144, %p145
      %p147 = scmp.ne.s32.totalorder %s138, %s139
      %p148 = scmp.eq.s32.totalorder %s30, 0
      %p149 = por %p147, %p148
      %p150 = scmp.ne.s32.totalorder %s138, %s139
      %p151 = scmp.eq.s32.totalorder %s31, 1
      %p152 = por %p150, %p151
      %p154 = scmp.ne.s32.totalorder %s139, %s153
      %p155 = scmp.eq.s32.totalorder %s31, 0
      %p156 = por %p154, %p155
      %s158 = sadd.s32 %s157, 1
      %p161 = scmp.eq.s32.totalorder %s25, 1
      %p162 = scmp.ne.s32.totalorder %s157, %s159
      %p163 = scmp.eq.s32.totalorder %s25, 0
      %p164 = por %p162, %p163
      %p165 = scmp.ne.s32.totalorder %s157, %s159
      %p166 = scmp.eq.s32.totalorder %s30, 1
      %p167 = por %p165, %p166
      %p168 = scmp.ne.s32.totalorder %s159, %s160
      %p169 = scmp.eq.s32.totalorder %s30, 0
      %p170 = por %p168, %p169
      %p171 = scmp.ne.s32.totalorder %s159, %s160
      %p172 = scmp.eq.s32.totalorder %s31, 1
      %p173 = por %p171, %p172
      %p175 = scmp.ne.s32.totalorder %s160, %s174
      %p176 = scmp.eq.s32.totalorder %s31, 0
      %p177 = por %p175, %p176
      %s179 = sadd.s32 %s178, 1
      %p182 = scmp.eq.s32.totalorder %s25, 1
      %p183 = scmp.ne.s32.totalorder %s178, %s180
      %p184 = scmp.eq.s32.totalorder %s25, 0
      %p185 = por %p183, %p184
      %p186 = scmp.ne.s32.totalorder %s178, %s180
      %p187 = scmp.eq.s32.totalorder %s30, 1
      %p188 = por %p186, %p187
      %p189 = scmp.ne.s32.totalorder %s180, %s181
      %p190 = scmp.eq.s32.totalorder %s30, 0
      %p191 = por %p189, %p190
      %p192 = scmp.ne.s32.totalorder %s180, %s181
      %p193 = scmp.eq.s32.totalorder %s31, 1
      %p194 = por %p192, %p193
      %p196 = scmp.ne.s32.totalorder %s181, %s195
      %p197 = scmp.eq.s32.totalorder %s31, 0
      %p198 = por %p196, %p197
      %s199 = ssub.s32 %s32, %s44
      %s200 = ssub.s32 %s33, %s40
      %s201 = sor.u32 %s199, %s200
      %p202 = scmp.eq.s32.totalorder %s201, 0
      %s204 = sadd.s32 %s203, 1
      %s205 = scalar_select %p202, %s203, %s204
      %p208 = pneg %p202
      %p209 = scmp.eq.s32.totalorder %s25, 1
      %p210 = por %p208, %p209
      %p211 = scmp.ne.s32.totalorder %s203, %s206
      %p212 = scmp.eq.s32.totalorder %s25, 0
      %p213 = por %p211, %p212
      %p214 = scmp.ne.s32.totalorder %s203, %s206
      %p215 = scmp.eq.s32.totalorder %s30, 1
      %p216 = por %p214, %p215
      %p217 = scmp.ne.s32.totalorder %s206, %s207
      %p218 = scmp.eq.s32.totalorder %s30, 0
      %p219 = por %p217, %p218
      %p220 = scmp.ne.s32.totalorder %s206, %s207
      %p221 = scmp.eq.s32.totalorder %s31, 1
      %p222 = por %p220, %p221
      %p224 = scmp.ne.s32.totalorder %s207, %s223
      %p225 = scmp.eq.s32.totalorder %s31, 0
      %p226 = por %p224, %p225
      %s227 = ssub.s32 %s32, %s44
      %s228 = ssub.s32 %s33, %s40
      %s229 = sor.u32 %s227, %s228
      %p230 = scmp.eq.s32.totalorder %s229, 0
      %s232 = sadd.s32 %s231, 1
      %s233 = scalar_select %p230, %s231, %s232
      %p236 = pneg %p230
      %p237 = scmp.eq.s32.totalorder %s25, 1
      %p238 = por %p236, %p237
      %p239 = scmp.ne.s32.totalorder %s231, %s234
      %p240 = scmp.eq.s32.totalorder %s25, 0
      %p241 = por %p239, %p240
      %p242 = scmp.ne.s32.totalorder %s231, %s234
      %p243 = scmp.eq.s32.totalorder %s30, 1
      %p244 = por %p242, %p243
      %p245 = scmp.ne.s32.totalorder %s234, %s235
      %p246 = scmp.eq.s32.totalorder %s30, 0
      %p247 = por %p245, %p246
      %p248 = scmp.ne.s32.totalorder %s234, %s235
      %p249 = scmp.eq.s32.totalorder %s31, 1
      %p250 = por %p248, %p249
      %p252 = scmp.ne.s32.totalorder %s235, %s251
      %p253 = scmp.eq.s32.totalorder %s31, 0
      %p254 = por %p252, %p253
      %p255 = scmp.le.s32.totalorder 1, %s25
      %p256 = scmp.lt.s32.totalorder %s25, 3
      %p257 = pnand %p255, %p256
      %p258 = pneg %p257
      // Predicated region
      $region9: #{tpu_custom_call.1} parent=5 // pred_check
        _
      $region10: #{tpu_custom_call.1} parent=5 // pred_check_branch
        %260 = sbr.rel (%p257) target = $region12
      $region11: #{tpu_custom_call.1} parent=5 // pred_region
        %s261 = ssub.s32 %s25, 1
        // Predicated region
        $region13: #{tpu_custom_call.1} parent=11 // pred_check
          %p262 = pneg %p86
        $region14: #{tpu_custom_call.1} parent=11 // pred_check_branch
          %264 = sbr.rel (%p262) target = $region16
        $region15: #{tpu_custom_call.1} parent=11 // pred_region
          _
        $region16: #{tpu_custom_call.1} parent=11 // pred_fallthru
          _
        // Predicated region
        $region17: #{tpu_custom_call.1} parent=11 // pred_check
          %p265 = pneg %p107
        $region18: #{tpu_custom_call.1} parent=11 // pred_check_branch
          %267 = sbr.rel (%p265) target = $region20
        $region19: #{tpu_custom_call.1} parent=11 // pred_region
          _
        $region20: #{tpu_custom_call.1} parent=11 // pred_fallthru
          _
        // Predicated region
        $region21: #{tpu_custom_call.1} parent=11 // pred_check
          %p268 = pneg %p128
        $region22: #{tpu_custom_call.1} parent=11 // pred_check_branch
          %270 = sbr.rel (%p268) target = $region24
        $region23: #{tpu_custom_call.1} parent=11 // pred_region
          %s272 = ssub.s32 256, 256
          %273 = vsyncadd [#allocation6], %s272
          %s274 = sshll.u32 [#allocation5], 4
          %s275 = int_to_ptr.vmem [resolvable:$true] %s274
          %280 = dma.hbm_to_vmem [thread:$0]  %s3, 256, %s275, [#allocation6], 64, 64, 4
        $region24: #{tpu_custom_call.1} parent=11 // pred_fallthru
          _
        // Predicated region
        $region25: #{tpu_custom_call.1} parent=11 // pred_check
          %p281 = pneg %p149
        $region26: #{tpu_custom_call.1} parent=11 // pred_check_branch
          %283 = sbr.rel (%p281) target = $region28
        $region27: #{tpu_custom_call.1} parent=11 // pred_region
          _
        $region28: #{tpu_custom_call.1} parent=11 // pred_fallthru
          _
        // Predicated region
        $region29: #{tpu_custom_call.1} parent=11 // pred_check
          %p284 = pneg %p170
        $region30: #{tpu_custom_call.1} parent=11 // pred_check_branch
          %286 = sbr.rel (%p284) target = $region32
        $region31: #{tpu_custom_call.1} parent=11 // pred_region
          %s288 = ssub.s32 256, 256
          %289 = vsyncadd [#allocation6], %s288
          %s290 = sshll.u32 [#allocation7], 4
          %s291 = int_to_ptr.vmem [resolvable:$true] %s290
          %296 = dma.hbm_to_vmem [thread:$0]  %s5, 256, %s291, [#allocation6], 64, 64, 4
        $region32: #{tpu_custom_call.1} parent=11 // pred_fallthru
          _
        // Predicated region
        $region33: #{tpu_custom_call.1} parent=11 // pred_check
          %p297 = pneg %p191
        $region34: #{tpu_custom_call.1} parent=11 // pred_check_branch
          %299 = sbr.rel (%p297) target = $region36
        $region35: #{tpu_custom_call.1} parent=11 // pred_region
          _
        $region36: #{tpu_custom_call.1} parent=11 // pred_fallthru
          _
      $region12: #{tpu_custom_call.1} parent=5 // pred_fallthru
        _
      %p300 = scmp.lt.s32.totalorder %s25, 2
      // Predicated region
      $region37: #{tpu_custom_call.1} parent=5 // pred_check
        %p301 = pneg %p300
      $region38: #{tpu_custom_call.1} parent=5 // pred_check_branch
        %303 = sbr.rel (%p301) target = $region40
      $region39: #{tpu_custom_call.1} parent=5 // pred_region
        // Predicated region
        $region41: #{tpu_custom_call.1} parent=39 // pred_check
          %p304 = pneg %p59
        $region42: #{tpu_custom_call.1} parent=39 // pred_check_branch
          %306 = sbr.rel (%p304) target = $region44
        $region43: #{tpu_custom_call.1} parent=39 // pred_region
          %s307 = sand.u32 %s49, 1
          %s308 = scalar_lea.sflag [#allocation3], %s307
          %s309 = sand.u32 %s49, 1
          %s310 = smul.addr %s309, 8
          %s311 = scalar_lea.vmem [#allocation2], %s310
          %s313 = ssub.s32 128, 128
          %314 = vsyncadd %s308, %s313
          %s315 = sadd.s32 %s33, %s32
          %s316 = smul.addr %s315, 128
          %s317 = scalar_lea.hbm %s0, %s316
          %s319 = sshll.u32 %s311, 4
          %s320 = int_to_ptr.vmem [resolvable:$true] %s319
          %322 = dma.hbm_to_vmem [thread:$0]  %s317, 128, %s320, %s308
        $region44: #{tpu_custom_call.1} parent=39 // pred_fallthru
          _
      $region40: #{tpu_custom_call.1} parent=5 // pred_fallthru
        _
      %p323 = scmp.le.s32.totalorder 1, %s25
      %p324 = scmp.lt.s32.totalorder %s25, 3
      %p325 = pnand %p323, %p324
      %p326 = pneg %p325
      // Predicated region
      $region45: #{tpu_custom_call.1} parent=5 // pred_check
        _
      $region46: #{tpu_custom_call.1} parent=5 // pred_check_branch
        %328 = sbr.rel (%p325) target = $region48
      $region47: #{tpu_custom_call.1} parent=5 // pred_region
        %s329 = ssub.s32 %s25, 1
        %s330 = sand.u32 %s52, 1
        %s331 = scalar_lea.sflag [#allocation3], %s330
        %s332 = sand.u32 %s52, 1
        %s333 = smul.addr %s332, 8
        %s334 = scalar_lea.vmem [#allocation2], %s333
        // Predicated region
        $region49: #{tpu_custom_call.1} parent=47 // pred_check
          %p335 = pneg %p65
        $region50: #{tpu_custom_call.1} parent=47 // pred_check_branch
          %337 = sbr.rel (%p335) target = $region52
        $region51: #{tpu_custom_call.1} parent=47 // pred_region
          %338 = dma.done %s331, 128
        $region52: #{tpu_custom_call.1} parent=47 // pred_fallthru
          _
        // Predicated region
        $region53: #{tpu_custom_call.1} parent=47 // pred_check
          %p339 = pneg %p128
        $region54: #{tpu_custom_call.1} parent=47 // pred_check_branch
          %341 = sbr.rel (%p339) target = $region56
        $region55: #{tpu_custom_call.1} parent=47 // pred_region
          %342 = dma.done [#allocation6], 256
        $region56: #{tpu_custom_call.1} parent=47 // pred_fallthru
          _
        // Predicated region
        $region57: #{tpu_custom_call.1} parent=47 // pred_check
          %p343 = pneg %p170
        $region58: #{tpu_custom_call.1} parent=47 // pred_check_branch
          %345 = sbr.rel (%p343) target = $region60
        $region59: #{tpu_custom_call.1} parent=47 // pred_region
          %346 = dma.done [#allocation6], 256
        $region60: #{tpu_custom_call.1} parent=47 // pred_fallthru
          _
        %s347 = sand.u32 %s52, 1
        %s348 = scalar_lea.sflag [#allocation3], %s347
        %s349 = sand.u32 %s52, 1
        %s350 = smul.addr %s349, 8
        %s351 = scalar_lea.vmem [#allocation2], %s350
        %p352 = pneg %p65
        %p353 = pneg %p62
        %p354 = pneg %p86
        %p355 = pneg %p83
        %p356 = pneg %p107
        %p357 = pneg %p104
        %p358 = pneg %p128
        %p359 = pneg %p125
        %p360 = pneg %p149
        %p361 = pneg %p146
        %p362 = pneg %p170
        %p363 = pneg %p167
        %p364 = pneg %p191
        %p365 = pneg %p188
        %p366 = pneg %p219
        %p367 = pneg %p216
        %s368 = sand.u32 %s206, 1
        %s369 = scalar_lea.sflag [#allocation4], %s368
        %s370 = sand.u32 %s206, 1
        %s371 = smul.addr %s370, 16
        %s372 = scalar_lea.vmem [#allocation8], %s371
        %p373 = pneg %p247
        %p374 = pneg %p244
        %s375 = sand.u32 %s234, 1
        %s376 = scalar_lea.sflag [#allocation10], %s375
        %s377 = sand.u32 %s234, 1
        %s378 = smul.addr %s377, 4
        %s379 = scalar_lea.vmem [#allocation9], %s378
        %v381 = vld [vmem:[%s334] sm:$0xff]
        %v382 = vld [vmem:[%s1] sm:$0x1]
        %v383 = vld [vmem:[%s2] sm:$0x1]
        %vm384 = vcmask 261120
        %v385 = vsel %vm384, %v381, 0.0
        %386 = vadd.xlane.f32.xlu0 %v385
        %v387 = vpop.xlane.xlu0 %386
        %v388 = vrcp.pop 32.0
        %v389 = vmul.f32 %v387, %v388
        %v390 = vsub.f32 %v381, %v389
        %v391 = vmul.f32 %v390, %v390
        %v392 = vsel %vm384, %v391, 0.0
        %393 = vadd.xlane.f32.xlu0 %v392
        %v394 = vpop.xlane.xlu0 %393
        %v395 = vmul.f32 %v394, %v388
        %v396 = vadd.f32 %v395, 1e-05
        %v397 = vrsqrt.pop %v396
        %v398 = vmul.f32 %v390, %v397
        %v400 = vlaneseq
        %v401 = vshrl.u32 %v400, 7
        %v402 = vsub.s32 0, %v401
        %v403 = vrot.slane %v382, %v402
        %v405 = vmul.f32 %v398, %v403
        %v407 = vlaneseq
        %v408 = vshrl.u32 %v407, 7
        %v409 = vsub.s32 0, %v408
        %v410 = vrot.slane %v383, %v409
        %v412 = vadd.f32 %v405, %v410
        %v413 = vpack.c.bf16 %v412, %v412
        %v414 = vld [vmem:[#allocation5] sm:$0xf]
        %v415 = vld [vmem:[#allocation5 + $0x4] sm:$0xf]
        %v416 = vld [vmem:[#allocation5 + $0x8] sm:$0xf]
        %v417 = vld [vmem:[#allocation5 + $0xc] sm:$0xf]
        %v418 = vld [vmem:[%s4] sm:$0x1]
        %v420 = vlaneseq
        %v421 = vshrl.u32 %v420, 7
        %v422 = vsub.s32 0, %v421
        %v423 = vrot.slane %v418, %v422
        %v429 = vunpack.c.l.b16 %v414
        %v430 = vunpack.c.l.b16 %v415
        %v431 = vunpack.c.l.b16 %v416
        %v432 = vunpack.c.l.b16 %v417
        %v433 = vpack.c.b16 %v430, %v429
        %v434 = vpack.c.b16 %v432, %v431
        %v438 = vsel %vm384, %v413, 0
        %440 = vmatprep.subr.bf16.mxu0 0
        %441 = vmatpush1.bf16.msra.mxu0 0
        %442 = vmatprep.subr.bf16.mxu0 0
        %443 = vmatpush1.bf16.msra.mxu0 0
        %444 = vmatprep.subr.bf16.mxu0 0
        %445 = vmatpush1.bf16.msra.mxu0 0
        %446 = vmatprep.subr.bf16.mxu0 0
        %447 = vmatpush1.bf16.msra.mxu0 0
        %448 = vmatprep.subr.bf16.mxu0 0
        %449 = vmatpush1.bf16.msra.mxu0 0
        %450 = vmatprep.subr.bf16.mxu0 0
        %451 = vmatpush1.bf16.msra.mxu0 0
        %452 = vmatprep.subr.bf16.mxu0 0
        %453 = vmatpush1.bf16.msra.mxu0 %v434
        %454 = vmatprep.subr.bf16.mxu0 0
        %455 = vmatpush1.bf16.msra.mxu0 %v433
        %456 = vmatprep.subr.bf16.mxu0 0
        %457 = vmatpush2.bf16.msra.mxu0 0
        %458 = vmatprep.subr.bf16.mxu0 0
        %459 = vmatpush2.bf16.msra.mxu0 0
        %460 = vmatprep.subr.bf16.mxu0 0
        %461 = vmatpush2.bf16.msra.mxu0 0
        %462 = vmatprep.subr.bf16.mxu0 0
        %463 = vmatpush2.bf16.msra.mxu0 0
        %464 = vmatprep.subr.bf16.mxu0 0
        %465 = vmatpush2.bf16.msra.mxu0 0
        %466 = vmatprep.subr.bf16.mxu0 0
        %467 = vmatpush2.bf16.msra.mxu0 0
        %468 = vmatprep.subr.bf16.mxu0 0
        %469 = vmatpush2.bf16.msra.mxu0 0
        %470 = vmatprep.subr.bf16.mxu0 0
        %471 = vmatpush2.bf16.msra.mxu0 0
        %472 = vmatprep.mubr.bf16.mxu0 0
        %473 = vmatmul.mubr.bf16.gmra.mxu0 %v438
        %v474 = vpop.f32.mrf.mxu0
        %v475 = vadd.f32 %v423, %v474
        %v476 = vpop.f32.mrf.mxu0
        %v477 = vpop.f32.mrf.mxu0
        %v478 = vpop.f32.mrf.mxu0
        %479 = vdwg.mxu0
        %v480 = vld [vmem:[#allocation7] sm:$0xf]
        %v481 = vld [vmem:[#allocation7 + $0x4] sm:$0xf]
        %v482 = vld [vmem:[#allocation7 + $0x8] sm:$0xf]
        %v483 = vld [vmem:[#allocation7 + $0xc] sm:$0xf]
        %v484 = vld [vmem:[%s6] sm:$0x1]
        %v486 = vlaneseq
        %v487 = vshrl.u32 %v486, 7
        %v488 = vsub.s32 0, %v487
        %v489 = vrot.slane %v484, %v488
        %v495 = vunpack.c.l.b16 %v480
        %v496 = vunpack.c.l.b16 %v481
        %v497 = vunpack.c.l.b16 %v482
        %v498 = vunpack.c.l.b16 %v483
        %v499 = vpack.c.b16 %v496, %v495
        %v500 = vpack.c.b16 %v498, %v497
        %503 = vmatprep.subr.bf16.mxu0 0
        %504 = vmatpush1.bf16.msra.mxu0 0
        %505 = vmatprep.subr.bf16.mxu0 0
        %506 = vmatpush1.bf16.msra.mxu0 0
        %507 = vmatprep.subr.bf16.mxu0 0
        %508 = vmatpush1.bf16.msra.mxu0 0
        %509 = vmatprep.subr.bf16.mxu0 0
        %510 = vmatpush1.bf16.msra.mxu0 0
        %511 = vmatprep.subr.bf16.mxu0 0
        %512 = vmatpush1.bf16.msra.mxu0 0
        %513 = vmatprep.subr.bf16.mxu0 0
        %514 = vmatpush1.bf16.msra.mxu0 0
        %515 = vmatprep.subr.bf16.mxu0 0
        %516 = vmatpush1.bf16.msra.mxu0 %v500
        %517 = vmatprep.subr.bf16.mxu0 0
        %518 = vmatpush1.bf16.msra.mxu0 %v499
        %519 = vmatprep.subr.bf16.mxu0 0
        %520 = vmatpush2.bf16.msra.mxu0 0
        %521 = vmatprep.subr.bf16.mxu0 0
        %522 = vmatpush2.bf16.msra.mxu0 0
        %523 = vmatprep.subr.bf16.mxu0 0
        %524 = vmatpush2.bf16.msra.mxu0 0
        %525 = vmatprep.subr.bf16.mxu0 0
        %526 = vmatpush2.bf16.msra.mxu0 0
        %527 = vmatprep.subr.bf16.mxu0 0
        %528 = vmatpush2.bf16.msra.mxu0 0
        %529 = vmatprep.subr.bf16.mxu0 0
        %530 = vmatpush2.bf16.msra.mxu0 0
        %531 = vmatprep.subr.bf16.mxu0 0
        %532 = vmatpush2.bf16.msra.mxu0 0
        %533 = vmatprep.subr.bf16.mxu0 0
        %534 = vmatpush2.bf16.msra.mxu0 0
        %535 = vmatprep.mubr.bf16.mxu0 0
        %536 = vmatmul.mubr.bf16.gmra.mxu0 %v438
        %v537 = vpop.f32.mrf.mxu0
        %v538 = vadd.f32 %v489, %v537
        %v539 = vpop.f32.mrf.mxu0
        %v540 = vpop.f32.mrf.mxu0
        %v541 = vpop.f32.mrf.mxu0
        %542 = vdwg.mxu0
        %v543 = vpack.c.bf16 %v538, %v538
        %vm544 = vcmask 257024
        %545 = vst.msk [vmem:[%s379] sm:$0xf] %vm544, %v543
        %546 = vxpose.xlu0.b32.start [1/16] %v475, 128
        %547 = vxpose.xlu0.b32.cont [2/16] 0.0, 128
        %548 = vxpose.xlu0.b32.cont [3/16] 0.0, 128
        %549 = vxpose.xlu0.b32.cont [4/16] 0.0, 128
        %550 = vxpose.xlu0.b32.cont [5/16] 0.0, 128
        %551 = vxpose.xlu0.b32.cont [6/16] 0.0, 128
        %552 = vxpose.xlu0.b32.cont [7/16] 0.0, 128
        %553 = vxpose.xlu0.b32.cont [8/16] 0.0, 128
        %554 = vxpose.xlu0.b32.cont [9/16] 0.0, 128
        %555 = vxpose.xlu0.b32.cont [10/16] 0.0, 128
        %556 = vxpose.xlu0.b32.cont [11/16] 0.0, 128
        %557 = vxpose.xlu0.b32.cont [12/16] 0.0, 128
        %558 = vxpose.xlu0.b32.cont [13/16] 0.0, 128
        %559 = vxpose.xlu0.b32.cont [14/16] 0.0, 128
        %560 = vxpose.xlu0.b32.cont [15/16] 0.0, 128
        %561 = vxpose.xlu0.b32.end [16/16] 0.0, 128
        %v562 = vpop.trf.xlu0
        %v563 = vpop.trf.xlu0
        %v564 = vpop.trf.xlu0
        %v565 = vpop.trf.xlu0
        %v566 = vpop.trf.xlu0
        %v567 = vpop.trf.xlu0
        %v568 = vpop.trf.xlu0
        %v569 = vpop.trf.xlu0
        %v570 = vpop.trf.xlu0
        %v571 = vpop.trf.xlu0
        %v572 = vpop.trf.xlu0
        %v573 = vpop.trf.xlu0
        %v574 = vpop.trf.xlu0
        %v575 = vpop.trf.xlu0
        %v576 = vpop.trf.xlu0
        %v577 = vpop.trf.xlu0
        %v578 = vpack.c.bf16 %v562, %v562
        %vm579 = vcmask 60416
        %580 = vst.msk [vmem:[%s372] sm:$0xf] %vm579, %v578
        %v581 = vpack.c.bf16 %v563, %v563
        %s582 = scalar_lea.vmem %s372, 4 [#allocation8]
        %583 = vst.msk [vmem:[%s582] sm:$0xf] %vm579, %v581
        %v584 = vpack.c.bf16 %v564, %v564
        %s585 = scalar_lea.vmem %s372, 8 [#allocation8]
        %586 = vst.msk [vmem:[%s585] sm:$0xf] %vm579, %v584
        %v587 = vpack.c.bf16 %v565, %v565
        %s588 = scalar_lea.vmem %s372, 12 [#allocation8]
        %589 = vst.msk [vmem:[%s588] sm:$0xf] %vm579, %v587
        %s590 = sand.u32 %s206, 1
        %s591 = scalar_lea.sflag [#allocation4], %s590
        %s592 = sand.u32 %s206, 1
        %s593 = smul.addr %s592, 16
        %s594 = scalar_lea.vmem [#allocation8], %s593
        %s595 = sand.u32 %s234, 1
        %s596 = scalar_lea.sflag [#allocation10], %s595
        %s597 = sand.u32 %s234, 1
        %s598 = smul.addr %s597, 4
        %s599 = scalar_lea.vmem [#allocation9], %s598
        // Predicated region
        $region61: #{tpu_custom_call.1} parent=47 // pred_check
          %p600 = pneg %p216
        $region62: #{tpu_custom_call.1} parent=47 // pred_check_branch
          %602 = sbr.rel (%p600) target = $region64
        $region63: #{tpu_custom_call.1} parent=47 // pred_region
          %s604 = ssub.s32 256, 256
          %605 = vsyncadd %s591, %s604
          %s606 = smul.addr %s34, 4
          %s607 = sadd.s32 %s35, %s606
          %s608 = smul.addr %s607, 64
          %s609 = scalar_lea.hbm %s7, %s608
          %s610 = sshll.u32 %s594, 4
          %s611 = int_to_ptr.vmem [resolvable:$true] %s610
          %616 = dma.vmem_to_hbm [thread:$0]  %s611, 256, %s609, %s591, 64, 64, 4
        $region64: #{tpu_custom_call.1} parent=47 // pred_fallthru
          _
        // Predicated region
        $region65: #{tpu_custom_call.1} parent=47 // pred_check
          %p617 = pneg %p244
        $region66: #{tpu_custom_call.1} parent=47 // pred_check_branch
          %619 = sbr.rel (%p617) target = $region68
        $region67: #{tpu_custom_call.1} parent=47 // pred_region
          %s621 = ssub.s32 64, 64
          %622 = vsyncadd %s596, %s621
          %s623 = sadd.s32 %s35, %s34
          %s624 = smul.addr %s623, 64
          %s625 = scalar_lea.hbm %s8, %s624
          %s627 = sshll.u32 %s599, 4
          %s628 = int_to_ptr.vmem [resolvable:$true] %s627
          %630 = dma.vmem_to_hbm [thread:$0]  %s628, 64, %s625, %s596
        $region68: #{tpu_custom_call.1} parent=47 // pred_fallthru
          _
      $region48: #{tpu_custom_call.1} parent=5 // pred_fallthru
        _
      %p631 = scmp.le.s32.totalorder 2, %s25
      // Predicated region
      $region69: #{tpu_custom_call.1} parent=5 // pred_check
        %p632 = pneg %p631
      $region70: #{tpu_custom_call.1} parent=5 // pred_check_branch
        %634 = sbr.rel (%p632) target = $region72
      $region71: #{tpu_custom_call.1} parent=5 // pred_region
        %s635 = ssub.s32 %s25, 2
        // Predicated region
        $region73: #{tpu_custom_call.1} parent=71 // pred_check
          %p636 = pneg %p222
        $region74: #{tpu_custom_call.1} parent=71 // pred_check_branch
          %638 = sbr.rel (%p636) target = $region76
        $region75: #{tpu_custom_call.1} parent=71 // pred_region
          %s639 = sand.u32 %s207, 1
          %s640 = scalar_lea.sflag [#allocation4], %s639
          %s641 = sand.u32 %s207, 1
          %s642 = smul.addr %s641, 16
          %s643 = scalar_lea.vmem [#allocation8], %s642
          %644 = dma.done %s640, 256
        $region76: #{tpu_custom_call.1} parent=71 // pred_fallthru
          _
        // Predicated region
        $region77: #{tpu_custom_call.1} parent=71 // pred_check
          %p645 = pneg %p250
        $region78: #{tpu_custom_call.1} parent=71 // pred_check_branch
          %647 = sbr.rel (%p645) target = $region80
        $region79: #{tpu_custom_call.1} parent=71 // pred_region
          %s648 = sand.u32 %s235, 1
          %s649 = scalar_lea.sflag [#allocation10], %s648
          %s650 = sand.u32 %s235, 1
          %s651 = smul.addr %s650, 4
          %s652 = scalar_lea.vmem [#allocation9], %s651
          %653 = dma.done %s649, 64
        $region80: #{tpu_custom_call.1} parent=71 // pred_fallthru
          _
      $region72: #{tpu_custom_call.1} parent=5 // pred_fallthru
        _
    $region6: #{tpu_custom_call.1} parent=1 // loop_footer
      %s29 = sadd.s32 1, %s25
    $region7: #{tpu_custom_call.1} parent=1 // loop_footer_branch
      %24 = sbr.rel target = $region3
    $region8: #{tpu_custom_call.1} parent=1 // loop_exit
      _
    %654 = vsyncpa [#allocation3], 1
    %s655 = scalar_lea.sflag [#allocation3], 1
    %656 = vsyncpa %s655, 1
    %657 = vsyncpa [#allocation6], 1
    %658 = vsyncpa [#allocation4], 1
    %s659 = scalar_lea.sflag [#allocation4], 1
    %660 = vsyncpa %s659, 1
    %661 = vsyncpa [#allocation10], 1
    %s662 = scalar_lea.sflag [#allocation10], 1
    %663 = vsyncpa %s662, 1

</llo_original>
